<compile_context>
chip_gen: v5e
topology: v5e:2x2
jax: 0.10.0
libtpu: 0.0.40
codegen_flags: <defaults>
</compile_context>

<pallas_src>
import functools

import jax
import jax.numpy as jnp
from jax.experimental import pallas as pl
from jax.experimental.pallas import tpu as pltpu


def _pad_to(n, m):
    return ((n + m - 1) // m) * m


def _mosaic_params(*dims):
    return pltpu.CompilerParams(dimension_semantics=tuple(dims))


def _pick_row_tile(m, tm):
    """Row tile: cap at tm; when everything fits in one tile, split into two
    blocks (>=8 rows each) so the 'parallel' axis can feed both v7x cores."""
    mp = _pad_to(m, 8)
    if mp > tm:
        tile = tm
    elif mp >= 16:
        tile = _pad_to((mp + 1) // 2, 8)
    else:
        tile = mp
    return _pad_to(m, tile), tile


# ---------------------------------------------------------------------------
# Pallas kernels
# ---------------------------------------------------------------------------
def _matmul_bias_act_kernel(x_ref, w_ref, b_ref, o_ref, *, apply_relu):
    # x: (TM, K) bf16 streamed; w: (K, N) bf16 resident; b: (1, N) f32 resident.
    acc = jnp.dot(x_ref[...], w_ref[...], preferred_element_type=jnp.float32)
    acc = acc + b_ref[...]
    if apply_relu:
        acc = jnp.maximum(acc, 0.0)
    o_ref[...] = acc.astype(o_ref.dtype)


def _fc_fused_kernel(x_ref, w1_ref, b1_ref, w2_ref, b2_ref, o_ref):
    # fc1 -> ReLU -> fc2; hidden activation never leaves VMEM.
    h = jnp.dot(x_ref[...], w1_ref[...], preferred_element_type=jnp.float32)
    h = jnp.maximum(h + b1_ref[...], 0.0)
    out = jnp.dot(h.astype(w2_ref.dtype), w2_ref[...],
                  preferred_element_type=jnp.float32)
    o_ref[...] = (out + b2_ref[...]).astype(o_ref.dtype)


def _maxpool_2x2_s1_kernel(x_ref, o_ref):
    # x: (TB, H, W, C) f32, o: (TB, H-1, W-1, C).
    # H-direction max first (cheap base-offset reads), then ONE W-shifted max
    # (the only sublane-crossing slice), all pure VPU work.
    _, ho, wo, _ = o_ref.shape
    x = x_ref[...]
    hmax = jnp.maximum(x[:, 0:ho, :, :], x[:, 1:ho + 1, :, :])
    o_ref[...] = jnp.maximum(hmax[:, :, 0:wo, :], hmax[:, :, 1:wo + 1, :])


# ---------------------------------------------------------------------------
# Wrappers around pallas_call
# ---------------------------------------------------------------------------
def matmul_bias_act(x, w, b, *, apply_relu, out_dtype=jnp.float32, tm=512):
    """(M, K) @ (K, N) + b (+ReLU). Weights/bias pre-prepared, no K padding."""
    M, K = x.shape
    Kw, N = w.shape
    assert Kw == K, (Kw, K)
    Mp, TM = _pick_row_tile(M, tm)

    xp = x.astype(jnp.bfloat16)
    if Mp != M:
        xp = jnp.pad(xp, ((0, Mp - M), (0, 0)))

    out = pl.pallas_call(
        functools.partial(_matmul_bias_act_kernel, apply_relu=apply_relu),
        out_shape=jax.ShapeDtypeStruct((Mp, N), out_dtype),
        grid=(Mp // TM,),
        in_specs=[
            pl.BlockSpec((TM, K), lambda i: (i, 0)),   # streamed row tiles
            pl.BlockSpec((K, N), lambda i: (0, 0)),    # resident weight
            pl.BlockSpec((1, N), lambda i: (0, 0)),    # resident bias
        ],
        out_specs=pl.BlockSpec((TM, N), lambda i: (i, 0)),
        compiler_params=_mosaic_params("parallel"),
    )(xp, w, b)
    return out[:M]


def fc_fused(x, w1, b1, w2, b2, *, tm=512):
    """relu(x @ w1 + b1) @ w2 + b2 in a single kernel; weights resident in VMEM."""
    M, K = x.shape
    K1, H1 = w1.shape
    H2, N2 = w2.shape
    assert K1 == K and H2 == H1
    Mp, TM = _pick_row_tile(M, tm)

    xp = x.astype(jnp.bfloat16)
    if Mp != M:
        xp = jnp.pad(xp, ((0, Mp - M), (0, 0)))

    out = pl.pallas_call(
        _fc_fused_kernel,
        out_shape=jax.ShapeDtypeStruct((Mp, N2), jnp.float32),
        grid=(Mp // TM,),
        in_specs=[
            pl.BlockSpec((TM, K), lambda i: (i, 0)),
            pl.BlockSpec((K, H1), lambda i: (0, 0)),
            pl.BlockSpec((1, H1), lambda i: (0, 0)),
            pl.BlockSpec((H1, N2), lambda i: (0, 0)),
            pl.BlockSpec((1, N2), lambda i: (0, 0)),
        ],
        out_specs=pl.BlockSpec((TM, N2), lambda i: (i, 0)),
        compiler_params=_mosaic_params("parallel"),
    )(xp, w1, b1, w2, b2)
    return out[:M]


def maxpool_2x2_s1(x, *, tb=8):
    """F.max_pool2d(x, 2, 1) on an NHWC tensor (real channels only, f32)."""
    N, H, W, C = x.shape
    TB = max(1, min(tb, N // 2)) if N >= 2 else 1   # >=2 grid blocks when possible
    Nb = _pad_to(N, TB)
    if Nb != N:
        x = jnp.pad(x, ((0, Nb - N), (0, 0), (0, 0), (0, 0)))

    out = pl.pallas_call(
        _maxpool_2x2_s1_kernel,
        out_shape=jax.ShapeDtypeStruct((Nb, H - 1, W - 1, C), x.dtype),
        grid=(Nb // TB,),
        in_specs=[pl.BlockSpec((TB, H, W, C), lambda i: (i, 0, 0, 0))],
        out_specs=pl.BlockSpec((TB, H - 1, W - 1, C), lambda i: (i, 0, 0, 0)),
        compiler_params=_mosaic_params("parallel"),
    )(x)
    return out[:N]


# ---------------------------------------------------------------------------
# Layout glue (plain JAX): NHWC im2col, rows=(n,ho,wo), cols=(kh,kw,c)
# ---------------------------------------------------------------------------
def _im2col_nhwc(x, kh, kw, stride, padding):
    N, H, W, C = x.shape
    if padding:
        x = jnp.pad(x, ((0, 0), (padding, padding), (padding, padding), (0, 0)))
    Hp, Wp = H + 2 * padding, W + 2 * padding
    Ho = (Hp - kh) // stride + 1
    Wo = (Wp - kw) // stride + 1
    taps = []
    for i in range(kh):
        for j in range(kw):
            taps.append(x[:, i:i + stride * (Ho - 1) + 1:stride,
                             j:j + stride * (Wo - 1) + 1:stride, :])
    patches = jnp.stack(taps, axis=3)                 # (N, Ho, Wo, kh*kw, C)
    return patches.reshape(N * Ho * Wo, kh * kw * C), Ho, Wo


def conv_relu(x_nhwc, w, b, kh, kw, stride, padding):
    """Conv2d + ReLU via im2col + Pallas matmul; NHWC output, real channels only."""
    N = x_nhwc.shape[0]
    cols, Ho, Wo = _im2col_nhwc(x_nhwc, kh, kw, stride, padding)
    out = matmul_bias_act(cols, w, b, apply_relu=True, out_dtype=jnp.float32)
    return out.reshape(N, Ho, Wo, w.shape[1])


# ---------------------------------------------------------------------------
# Parameters (PyTorch layout) and one-time prep (transpose / cast, no padding)
# ---------------------------------------------------------------------------
def init_params(key):
    ks = jax.random.split(key, 8)
    s = 0.05
    return {
        "conv1_w": s * jax.random.normal(ks[0], (16, 1, 8, 8), jnp.float32),
        "conv1_b": s * jax.random.normal(ks[1], (16,), jnp.float32),
        "conv2_w": s * jax.random.normal(ks[2], (32, 16, 4, 4), jnp.float32),
        "conv2_b": s * jax.random.normal(ks[3], (32,), jnp.float32),
        "fc1_w": s * jax.random.normal(ks[4], (32, 32 * 4 * 4), jnp.float32),
        "fc1_b": s * jax.random.normal(ks[5], (32,), jnp.float32),
        "fc2_w": s * jax.random.normal(ks[6], (10, 32), jnp.float32),
        "fc2_b": s * jax.random.normal(ks[7], (10,), jnp.float32),
    }


def prepare_params(p):
    """One-time weight prep: OIHW -> (kh*kw*ci, co) matrices in bf16; biases (1, co) f32."""
    def conv_w(w):  # (O, I, kh, kw) -> (kh, kw, I, O) -> (kh*kw*I, O)
        return jnp.transpose(w, (2, 3, 1, 0)).reshape(-1, w.shape[0]).astype(jnp.bfloat16)

    def bias(b):
        return b.astype(jnp.float32).reshape(1, -1)

    # PyTorch flattens (c, h, w); our NHWC flatten is (h, w, c) -> reorder fc1 rows.
    f1 = jnp.transpose(p["fc1_w"].reshape(32, 32, 4, 4), (2, 3, 1, 0)).reshape(512, 32)
    return {
        "c1_w": conv_w(p["conv1_w"]), "c1_b": bias(p["conv1_b"]),   # (64, 16)
        "c2_w": conv_w(p["conv2_w"]), "c2_b": bias(p["conv2_b"]),   # (256, 32)
        "f1_w": f1.astype(jnp.bfloat16), "f1_b": bias(p["fc1_b"]),  # (512, 32)
        "f2_w": p["fc2_w"].T.astype(jnp.bfloat16), "f2_b": bias(p["fc2_b"]),  # (32, 10)
    }


# ---------------------------------------------------------------------------
# SampleConvNet forward (NCHW interface, NHWC internally, real channels only)
# ---------------------------------------------------------------------------
def sample_convnet_forward(prep, x_nchw):
    n = x_nchw.shape[0]
    x = jnp.transpose(x_nchw, (0, 2, 3, 1)).astype(jnp.float32)       # NHWC (N,28,28,1)
    h = conv_relu(x, prep["c1_w"], prep["c1_b"], 8, 8, 2, 3)          # (N,14,14,16)
    h = maxpool_2x2_s1(h)                                             # (N,13,13,16)
    h = conv_relu(h, prep["c2_w"], prep["c2_b"], 4, 4, 2, 0)          # (N,5,5,32)
    h = maxpool_2x2_s1(h)                                             # (N,4,4,32)
    h = h.reshape(n, 4 * 4 * 32)                                      # (N,512)
    return fc_fused(h, prep["f1_w"], prep["f1_b"], prep["f2_w"], prep["f2_b"])


def reference_forward(params, x):
    """Pure-JAX f32 reference (lax conv / reduce_window) for correctness."""
    def conv(h, w, b, stride, padding):
        out = jax.lax.conv_general_dilated(
            h, w, (stride, stride), [(padding, padding), (padding, padding)],
            dimension_numbers=("NCHW", "OIHW", "NCHW"))
        return out + b[None, :, None, None]

    def pool(h):
        return jax.lax.reduce_window(h, -jnp.inf, jax.lax.max,
                                     (1, 1, 2, 2), (1, 1, 1, 1), "VALID")

    h = jax.nn.relu(conv(x, params["conv1_w"], params["conv1_b"], 2, 3))
    h = pool(h)
    h = jax.nn.relu(conv(h, params["conv2_w"], params["conv2_b"], 2, 0))
    h = pool(h)
    h = h.reshape(h.shape[0], -1)
    h = jax.nn.relu(h @ params["fc1_w"].T + params["fc1_b"])
    return h @ params["fc2_w"].T + params["fc2_b"]


if __name__ == "__main__":
    key = jax.random.PRNGKey(0)
    pkey, xkey = jax.random.split(key)
    params = init_params(pkey)
    prep = prepare_params(params)
    x = jax.random.normal(xkey, (2, 1, 28, 28), jnp.float32)  # NCHW, as in PyTorch

    fwd = jax.jit(sample_convnet_forward)
    out = jax.block_until_ready(fwd(prep, x))
    assert out.shape == (2, 10), out.shape

    ref = reference_forward(params, x)
    err = float(jnp.max(jnp.abs(out - ref)))
    assert jnp.allclose(out, ref, atol=2e-2, rtol=2e-2), ("mismatch vs reference", err)

    print("KERNEL_OK")
</pallas_src>

<mosaic_0001>
module attributes {stable_mosaic.version = 11 : i64} {
  func.func @_matmul_bias_act_kernel(%arg0: i32, %arg1: memref<200x64xbf16, #tpu.memory_space<vmem>>, %arg2: memref<64x16xbf16, #tpu.memory_space<vmem>>, %arg3: memref<1x16xf32, #tpu.memory_space<vmem>>, %arg4: memref<200x16xf32, #tpu.memory_space<vmem>>) attributes {dimension_semantics = [#tpu.dimension_semantics<parallel>], iteration_bounds = array<i64: 2>, scalar_prefetch = 0 : i64, scratch_operands = 0 : i64, tpu.core_type = #tpu.core_type<tc>, window_params = [{transform_indices = @transform_0, window_bounds = array<i64: 200, 64>}, {pipeline_mode = #tpu.pipeline_mode<synchronous>, transform_indices = @transform_1, window_bounds = array<i64: 64, 16>}, {pipeline_mode = #tpu.pipeline_mode<synchronous>, transform_indices = @transform_2, window_bounds = array<i64: 1, 16>}, {transform_indices = @transform_3, window_bounds = array<i64: 200, 16>}]} {
    %c0 = arith.constant 0 : index
    %c0_0 = arith.constant 0 : index
    %0 = vector.load %arg1[%c0, %c0_0] : memref<200x64xbf16, #tpu.memory_space<vmem>>, vector<200x64xbf16>
    %c0_1 = arith.constant 0 : index
    %c0_2 = arith.constant 0 : index
    %1 = vector.load %arg2[%c0_1, %c0_2] : memref<64x16xbf16, #tpu.memory_space<vmem>>, vector<64x16xbf16>
    %cst = arith.constant dense<0.000000e+00> : vector<200x16xf32>
    %2 = tpu.matmul %0, %1, %cst {dimension_numbers = #tpu.dot_dimension_numbers<[1], [0], [0], [1], [0, 0, 1, 1], [], []>} : vector<200x64xbf16>, vector<64x16xbf16>, vector<200x16xf32> -> vector<200x16xf32>
    %c0_3 = arith.constant 0 : index
    %c0_4 = arith.constant 0 : index
    %3 = vector.load %arg3[%c0_3, %c0_4] : memref<1x16xf32, #tpu.memory_space<vmem>>, vector<1x16xf32>
    %4 = vector.broadcast %3 : vector<1x16xf32> to vector<200x16xf32>
    %5 = arith.addf %2, %4 : vector<200x16xf32>
    %cst_5 = arith.constant 0.000000e+00 : f32
    %6 = vector.broadcast %cst_5 : f32 to vector<200x16xf32>
    %7 = arith.maximumf %5, %6 : vector<200x16xf32>
    %c0_6 = arith.constant 0 : index
    %c0_7 = arith.constant 0 : index
    %8 = vector.load %arg4[%c0_6, %c0_7] : memref<200x16xf32, #tpu.memory_space<vmem>>, vector<200x16xf32>
    tpu.vector_store %arg4[%c0_6, %c0_7], %7 {strides = array<i32>} : memref<200x16xf32, #tpu.memory_space<vmem>>, vector<200x16xf32>,
    return
  }
  func.func @transform_0(%arg0: i32) -> (i32, i32) {
    %c0_i32 = arith.constant 0 : i32
    %c0_i32_0 = arith.constant 0 : i32
    return %arg0, %c0_i32 : i32, i32
  }
  func.func @transform_1(%arg0: i32) -> (i32, i32) {
    %c0_i32 = arith.constant 0 : i32
    %c0_i32_0 = arith.constant 0 : i32
    %c0_i32_1 = arith.constant 0 : i32
    return %c0_i32, %c0_i32_0 : i32, i32
  }
  func.func @transform_2(%arg0: i32) -> (i32, i32) {
    %c0_i32 = arith.constant 0 : i32
    %c0_i32_0 = arith.constant 0 : i32
    %c0_i32_1 = arith.constant 0 : i32
    return %c0_i32, %c0_i32_0 : i32, i32
  }
  func.func @transform_3(%arg0: i32) -> (i32, i32) {
    %c0_i32 = arith.constant 0 : i32
    %c0_i32_0 = arith.constant 0 : i32
    return %arg0, %c0_i32 : i32, i32
  }
}

module attributes {stable_mosaic.version = 11 : i64} {
  func.func @_maxpool_2x2_s1_kernel(%arg0: i32, %arg1: memref<1x14x14x16xf32, #tpu.memory_space<vmem>>, %arg2: memref<1x13x13x16xf32, #tpu.memory_space<vmem>>) attributes {dimension_semantics = [#tpu.dimension_semantics<parallel>], iteration_bounds = array<i64: 2>, scalar_prefetch = 0 : i64, scratch_operands = 0 : i64, tpu.core_type = #tpu.core_type<tc>, window_params = [{transform_indices = @transform_0, window_bounds = array<i64: 1, 14, 14, 16>}, {transform_indices = @transform_1, window_bounds = array<i64: 1, 13, 13, 16>}]} {
    %c0 = arith.constant 0 : index
    %c0_0 = arith.constant 0 : index
    %c0_1 = arith.constant 0 : index
    %c0_2 = arith.constant 0 : index
    %0 = vector.load %arg1[%c0, %c0_0, %c0_1, %c0_2] : memref<1x14x14x16xf32, #tpu.memory_space<vmem>>, vector<1x14x14x16xf32>
    %1 = vector.extract_strided_slice %0 {offsets = [0, 0, 0, 0], sizes = [1, 13, 14, 16], strides = [1, 1, 1, 1]} : vector<1x14x14x16xf32> to vector<1x13x14x16xf32>
    %2 = vector.extract_strided_slice %0 {offsets = [0, 1, 0, 0], sizes = [1, 13, 14, 16], strides = [1, 1, 1, 1]} : vector<1x14x14x16xf32> to vector<1x13x14x16xf32>
    %3 = arith.maximumf %1, %2 : vector<1x13x14x16xf32>
    %4 = vector.extract_strided_slice %3 {offsets = [0, 0, 0, 0], sizes = [1, 13, 13, 16], strides = [1, 1, 1, 1]} : vector<1x13x14x16xf32> to vector<1x13x13x16xf32>
    %5 = vector.extract_strided_slice %3 {offsets = [0, 0, 1, 0], sizes = [1, 13, 13, 16], strides = [1, 1, 1, 1]} : vector<1x13x14x16xf32> to vector<1x13x13x16xf32>
    %6 = arith.maximumf %4, %5 : vector<1x13x13x16xf32>
    %c0_3 = arith.constant 0 : index
    %c0_4 = arith.constant 0 : index
    %c0_5 = arith.constant 0 : index
    %c0_6 = arith.constant 0 : index
    %7 = vector.load %arg2[%c0_3, %c0_4, %c0_5, %c0_6] : memref<1x13x13x16xf32, #tpu.memory_space<vmem>>, vector<1x13x13x16xf32>
    tpu.vector_store %arg2[%c0_3, %c0_4, %c0_5, %c0_6], %6 {strides = array<i32>} : memref<1x13x13x16xf32, #tpu.memory_space<vmem>>, vector<1x13x13x16xf32>,
    return
  }
  func.func @transform_0(%arg0: i32) -> (i32, i32, i32, i32) {
    %c0_i32 = arith.constant 0 : i32
    %c0_i32_0 = arith.constant 0 : i32
    %c0_i32_1 = arith.constant 0 : i32
    %c0_i32_2 = arith.constant 0 : i32
    return %arg0, %c0_i32, %c0_i32_0, %c0_i32_1 : i32, i32, i32, i32
  }
  func.func @transform_1(%arg0: i32) -> (i32, i32, i32, i32) {
    %c0_i32 = arith.constant 0 : i32
    %c0_i32_0 = arith.constant 0 : i32
    %c0_i32_1 = arith.constant 0 : i32
    %c0_i32_2 = arith.constant 0 : i32
    return %arg0, %c0_i32, %c0_i32_0, %c0_i32_1 : i32, i32, i32, i32
  }
}

module attributes {stable_mosaic.version = 11 : i64} {
  func.func @_matmul_bias_act_kernel(%arg0: i32, %arg1: memref<32x256xbf16, #tpu.memory_space<vmem>>, %arg2: memref<256x32xbf16, #tpu.memory_space<vmem>>, %arg3: memref<1x32xf32, #tpu.memory_space<vmem>>, %arg4: memref<32x32xf32, #tpu.memory_space<vmem>>) attributes {dimension_semantics = [#tpu.dimension_semantics<parallel>], iteration_bounds = array<i64: 2>, scalar_prefetch = 0 : i64, scratch_operands = 0 : i64, tpu.core_type = #tpu.core_type<tc>, window_params = [{transform_indices = @transform_0, window_bounds = array<i64: 32, 256>}, {pipeline_mode = #tpu.pipeline_mode<synchronous>, transform_indices = @transform_1, window_bounds = array<i64: 256, 32>}, {pipeline_mode = #tpu.pipeline_mode<synchronous>, transform_indices = @transform_2, window_bounds = array<i64: 1, 32>}, {transform_indices = @transform_3, window_bounds = array<i64: 32, 32>}]} {
    %c0 = arith.constant 0 : index
    %c0_0 = arith.constant 0 : index
    %0 = vector.load %arg1[%c0, %c0_0] : memref<32x256xbf16, #tpu.memory_space<vmem>>, vector<32x256xbf16>
    %c0_1 = arith.constant 0 : index
    %c0_2 = arith.constant 0 : index
    %1 = vector.load %arg2[%c0_1, %c0_2] : memref<256x32xbf16, #tpu.memory_space<vmem>>, vector<256x32xbf16>
    %cst = arith.constant dense<0.000000e+00> : vector<32x32xf32>
    %2 = tpu.matmul %0, %1, %cst {dimension_numbers = #tpu.dot_dimension_numbers<[1], [0], [0], [1], [0, 0, 1, 1], [], []>} : vector<32x256xbf16>, vector<256x32xbf16>, vector<32x32xf32> -> vector<32x32xf32>
    %c0_3 = arith.constant 0 : index
    %c0_4 = arith.constant 0 : index
    %3 = vector.load %arg3[%c0_3, %c0_4] : memref<1x32xf32, #tpu.memory_space<vmem>>, vector<1x32xf32>
    %4 = vector.broadcast %3 : vector<1x32xf32> to vector<32x32xf32>
    %5 = arith.addf %2, %4 : vector<32x32xf32>
    %cst_5 = arith.constant 0.000000e+00 : f32
    %6 = vector.broadcast %cst_5 : f32 to vector<32x32xf32>
    %7 = arith.maximumf %5, %6 : vector<32x32xf32>
    %c0_6 = arith.constant 0 : index
    %c0_7 = arith.constant 0 : index
    %8 = vector.load %arg4[%c0_6, %c0_7] : memref<32x32xf32, #tpu.memory_space<vmem>>, vector<32x32xf32>
    tpu.vector_store %arg4[%c0_6, %c0_7], %7 {strides = array<i32>} : memref<32x32xf32, #tpu.memory_space<vmem>>, vector<32x32xf32>,
    return
  }
  func.func @transform_0(%arg0: i32) -> (i32, i32) {
    %c0_i32 = arith.constant 0 : i32
    %c0_i32_0 = arith.constant 0 : i32
    return %arg0, %c0_i32 : i32, i32
  }
  func.func @transform_1(%arg0: i32) -> (i32, i32) {
    %c0_i32 = arith.constant 0 : i32
    %c0_i32_0 = arith.constant 0 : i32
    %c0_i32_1 = arith.constant 0 : i32
    return %c0_i32, %c0_i32_0 : i32, i32
  }
  func.func @transform_2(%arg0: i32) -> (i32, i32) {
    %c0_i32 = arith.constant 0 : i32
    %c0_i32_0 = arith.constant 0 : i32
    %c0_i32_1 = arith.constant 0 : i32
    return %c0_i32, %c0_i32_0 : i32, i32
  }
  func.func @transform_3(%arg0: i32) -> (i32, i32) {
    %c0_i32 = arith.constant 0 : i32
    %c0_i32_0 = arith.constant 0 : i32
    return %arg0, %c0_i32 : i32, i32
  }
}

module attributes {stable_mosaic.version = 11 : i64} {
  func.func @_maxpool_2x2_s1_kernel(%arg0: i32, %arg1: memref<1x5x5x32xf32, #tpu.memory_space<vmem>>, %arg2: memref<1x4x4x32xf32, #tpu.memory_space<vmem>>) attributes {dimension_semantics = [#tpu.dimension_semantics<parallel>], iteration_bounds = array<i64: 2>, scalar_prefetch = 0 : i64, scratch_operands = 0 : i64, tpu.core_type = #tpu.core_type<tc>, window_params = [{transform_indices = @transform_0, window_bounds = array<i64: 1, 5, 5, 32>}, {transform_indices = @transform_1, window_bounds = array<i64: 1, 4, 4, 32>}]} {
    %c0 = arith.constant 0 : index
    %c0_0 = arith.constant 0 : index
    %c0_1 = arith.constant 0 : index
    %c0_2 = arith.constant 0 : index
    %0 = vector.load %arg1[%c0, %c0_0, %c0_1, %c0_2] : memref<1x5x5x32xf32, #tpu.memory_space<vmem>>, vector<1x5x5x32xf32>
    %1 = vector.extract_strided_slice %0 {offsets = [0, 0, 0, 0], sizes = [1, 4, 5, 32], strides = [1, 1, 1, 1]} : vector<1x5x5x32xf32> to vector<1x4x5x32xf32>
    %2 = vector.extract_strided_slice %0 {offsets = [0, 1, 0, 0], sizes = [1, 4, 5, 32], strides = [1, 1, 1, 1]} : vector<1x5x5x32xf32> to vector<1x4x5x32xf32>
    %3 = arith.maximumf %1, %2 : vector<1x4x5x32xf32>
    %4 = vector.extract_strided_slice %3 {offsets = [0, 0, 0, 0], sizes = [1, 4, 4, 32], strides = [1, 1, 1, 1]} : vector<1x4x5x32xf32> to vector<1x4x4x32xf32>
    %5 = vector.extract_strided_slice %3 {offsets = [0, 0, 1, 0], sizes = [1, 4, 4, 32], strides = [1, 1, 1, 1]} : vector<1x4x5x32xf32> to vector<1x4x4x32xf32>
    %6 = arith.maximumf %4, %5 : vector<1x4x4x32xf32>
    %c0_3 = arith.constant 0 : index
    %c0_4 = arith.constant 0 : index
    %c0_5 = arith.constant 0 : index
    %c0_6 = arith.constant 0 : index
    %7 = vector.load %arg2[%c0_3, %c0_4, %c0_5, %c0_6] : memref<1x4x4x32xf32, #tpu.memory_space<vmem>>, vector<1x4x4x32xf32>
    tpu.vector_store %arg2[%c0_3, %c0_4, %c0_5, %c0_6], %6 {strides = array<i32>} : memref<1x4x4x32xf32, #tpu.memory_space<vmem>>, vector<1x4x4x32xf32>,
    return
  }
  func.func @transform_0(%arg0: i32) -> (i32, i32, i32, i32) {
    %c0_i32 = arith.constant 0 : i32
    %c0_i32_0 = arith.constant 0 : i32
    %c0_i32_1 = arith.constant 0 : i32
    %c0_i32_2 = arith.constant 0 : i32
    return %arg0, %c0_i32, %c0_i32_0, %c0_i32_1 : i32, i32, i32, i32
  }
  func.func @transform_1(%arg0: i32) -> (i32, i32, i32, i32) {
    %c0_i32 = arith.constant 0 : i32
    %c0_i32_0 = arith.constant 0 : i32
    %c0_i32_1 = arith.constant 0 : i32
    %c0_i32_2 = arith.constant 0 : i32
    return %arg0, %c0_i32, %c0_i32_0, %c0_i32_1 : i32, i32, i32, i32
  }
}

module attributes {stable_mosaic.version = 11 : i64} {
  func.func @_fc_fused_kernel(%arg0: i32, %arg1: memref<8x512xbf16, #tpu.memory_space<vmem>>, %arg2: memref<512x32xbf16, #tpu.memory_space<vmem>>, %arg3: memref<1x32xf32, #tpu.memory_space<vmem>>, %arg4: memref<32x10xbf16, #tpu.memory_space<vmem>>, %arg5: memref<1x10xf32, #tpu.memory_space<vmem>>, %arg6: memref<8x10xf32, #tpu.memory_space<vmem>>) attributes {dimension_semantics = [#tpu.dimension_semantics<parallel>], iteration_bounds = array<i64: 1>, scalar_prefetch = 0 : i64, scratch_operands = 0 : i64, tpu.core_type = #tpu.core_type<tc>, window_params = [{transform_indices = @transform_0, window_bounds = array<i64: 8, 512>}, {pipeline_mode = #tpu.pipeline_mode<synchronous>, transform_indices = @transform_1, window_bounds = array<i64: 512, 32>}, {pipeline_mode = #tpu.pipeline_mode<synchronous>, transform_indices = @transform_2, window_bounds = array<i64: 1, 32>}, {pipeline_mode = #tpu.pipeline_mode<synchronous>, transform_indices = @transform_3, window_bounds = array<i64: 32, 10>}, {pipeline_mode = #tpu.pipeline_mode<synchronous>, transform_indices = @transform_4, window_bounds = array<i64: 1, 10>}, {transform_indices = @transform_5, window_bounds = array<i64: 8, 10>}]} {
    %c0 = arith.constant 0 : index
    %c0_0 = arith.constant 0 : index
    %0 = vector.load %arg1[%c0, %c0_0] : memref<8x512xbf16, #tpu.memory_space<vmem>>, vector<8x512xbf16>
    %c0_1 = arith.constant 0 : index
    %c0_2 = arith.constant 0 : index
    %1 = vector.load %arg2[%c0_1, %c0_2] : memref<512x32xbf16, #tpu.memory_space<vmem>>, vector<512x32xbf16>
    %cst = arith.constant dense<0.000000e+00> : vector<8x32xf32>
    %2 = tpu.matmul %0, %1, %cst {dimension_numbers = #tpu.dot_dimension_numbers<[1], [0], [0], [1], [0, 0, 1, 1], [], []>} : vector<8x512xbf16>, vector<512x32xbf16>, vector<8x32xf32> -> vector<8x32xf32>
    %c0_3 = arith.constant 0 : index
    %c0_4 = arith.constant 0 : index
    %3 = vector.load %arg3[%c0_3, %c0_4] : memref<1x32xf32, #tpu.memory_space<vmem>>, vector<1x32xf32>
    %4 = vector.broadcast %3 : vector<1x32xf32> to vector<8x32xf32>
    %5 = arith.addf %2, %4 : vector<8x32xf32>
    %cst_5 = arith.constant 0.000000e+00 : f32
    %6 = vector.broadcast %cst_5 : f32 to vector<8x32xf32>
    %7 = arith.maximumf %5, %6 : vector<8x32xf32>
    %8 = arith.truncf %7 : vector<8x32xf32> to vector<8x32xbf16>
    %c0_6 = arith.constant 0 : index
    %c0_7 = arith.constant 0 : index
    %9 = vector.load %arg4[%c0_6, %c0_7] : memref<32x10xbf16, #tpu.memory_space<vmem>>, vector<32x10xbf16>
    %cst_8 = arith.constant dense<0.000000e+00> : vector<8x10xf32>
    %10 = tpu.matmul %8, %9, %cst_8 {dimension_numbers = #tpu.dot_dimension_numbers<[1], [0], [0], [1], [0, 0, 1, 1], [], []>} : vector<8x32xbf16>, vector<32x10xbf16>, vector<8x10xf32> -> vector<8x10xf32>
    %c0_9 = arith.constant 0 : index
    %c0_10 = arith.constant 0 : index
    %11 = vector.load %arg5[%c0_9, %c0_10] : memref<1x10xf32, #tpu.memory_space<vmem>>, vector<1x10xf32>
    %12 = vector.broadcast %11 : vector<1x10xf32> to vector<8x10xf32>
    %13 = arith.addf %10, %12 : vector<8x10xf32>
    %c0_11 = arith.constant 0 : index
    %c0_12 = arith.constant 0 : index
    %14 = vector.load %arg6[%c0_11, %c0_12] : memref<8x10xf32, #tpu.memory_space<vmem>>, vector<8x10xf32>
    tpu.vector_store %arg6[%c0_11, %c0_12], %13 {strides = array<i32>} : memref<8x10xf32, #tpu.memory_space<vmem>>, vector<8x10xf32>,
    return
  }
  func.func @transform_0(%arg0: i32) -> (i32, i32) {
    %c0_i32 = arith.constant 0 : i32
    %c0_i32_0 = arith.constant 0 : i32
    return %arg0, %c0_i32 : i32, i32
  }
  func.func @transform_1(%arg0: i32) -> (i32, i32) {
    %c0_i32 = arith.constant 0 : i32
    %c0_i32_0 = arith.constant 0 : i32
    %c0_i32_1 = arith.constant 0 : i32
    return %c0_i32, %c0_i32_0 : i32, i32
  }
  func.func @transform_2(%arg0: i32) -> (i32, i32) {
    %c0_i32 = arith.constant 0 : i32
    %c0_i32_0 = arith.constant 0 : i32
    %c0_i32_1 = arith.constant 0 : i32
    return %c0_i32, %c0_i32_0 : i32, i32
  }
  func.func @transform_3(%arg0: i32) -> (i32, i32) {
    %c0_i32 = arith.constant 0 : i32
    %c0_i32_0 = arith.constant 0 : i32
    %c0_i32_1 = arith.constant 0 : i32
    return %c0_i32, %c0_i32_0 : i32, i32
  }
  func.func @transform_4(%arg0: i32) -> (i32, i32) {
    %c0_i32 = arith.constant 0 : i32
    %c0_i32_0 = arith.constant 0 : i32
    %c0_i32_1 = arith.constant 0 : i32
    return %c0_i32, %c0_i32_0 : i32, i32
  }
  func.func @transform_5(%arg0: i32) -> (i32, i32) {
    %c0_i32 = arith.constant 0 : i32
    %c0_i32_0 = arith.constant 0 : i32
    return %arg0, %c0_i32 : i32, i32
  }
}

</mosaic_0001>

<llo_original>
// kernel: sample_convnet_forward.6
$region0: #{sample_convnet_forward.6}
  #allocation0 [shape = 'u32[]', space=smem, size = 0x4, offset = 0x4, fixed_abs, tag = 'smem constant byte address 0x4 - core index']
  #allocation1 [shape = 'u32[72,128]{1,0:T(1,128)}', space=vmem, size = 0x9000, scoped, tag = 'internal scratch']
  %s0 = inlined_call_operand.vmem [shape: f32[2,14,14,16], index: 0, kind: input, shape index: {}]
  %s1 = inlined_call_operand.vmem [shape: f32[2,13,13,16], index: 1, kind: output, shape index: {}]
  %s2 = sld [smem:[#allocation0]]
  $region37: #{sample_convnet_forward.6} parent=0
    _
  %s4 = ssub.s32 1, %s2
  %s5 = scalar_select 0, %s4, %s2
  loop: start=0, step=1, limit=4
  $region2: #{sample_convnet_forward.6} parent=0 // loop_pre_header
    _
  $region3: #{sample_convnet_forward.6} parent=0 // loop_header
    %s7 = sphi 0, %s11
    %p8 = scmp.ge.s32.totalorder %s7, 4
    %s17 = sphi 0, %s19
    %s20 = sphi 0, %s17
    %s21 = sphi 0, %s20
    %s37 = sphi 0, %s21
    %s43 = sphi 0, %s45
    %s46 = sphi 0, %s43
    %s47 = sphi 0, %s46
    %s63 = sphi 0, %s47
  $region4: #{sample_convnet_forward.6} parent=0 // loop_header_branch
    %10 = sbr.rel (%p8) target = $region8
  $region5: #{sample_convnet_forward.6} parent=0 // loop_body
    %s12 = ssub.s32 %s7, 1
    %s13 = ssub.s32 %s7, 2
    %s14 = sadd.s32 %s7, 1
    %s15 = ssub.s32 %s7, %s14
    %p16 = scmp.eq.s32.totalorder %s15, 0
    %s18 = sadd.s32 %s17, 1
    %s19 = scalar_select %p16, %s17, %s18
    %p22 = pneg %p16
    %p23 = scmp.eq.s32.totalorder %s7, 1
    %p24 = por %p22, %p23
    %p25 = scmp.ne.s32.totalorder %s17, %s20
    %p26 = scmp.eq.s32.totalorder %s7, 0
    %p27 = por %p25, %p26
    %p28 = scmp.ne.s32.totalorder %s17, %s20
    %p29 = scmp.eq.s32.totalorder %s12, 1
    %p30 = por %p28, %p29
    %p31 = scmp.ne.s32.totalorder %s20, %s21
    %p32 = scmp.eq.s32.totalorder %s12, 0
    %p33 = por %p31, %p32
    %p34 = scmp.ne.s32.totalorder %s20, %s21
    %p35 = scmp.eq.s32.totalorder %s13, 1
    %p36 = por %p34, %p35
    %p38 = scmp.ne.s32.totalorder %s21, %s37
    %p39 = scmp.eq.s32.totalorder %s13, 0
    %p40 = por %p38, %p39
    %s41 = ssub.s32 %s7, %s14
    %p42 = scmp.eq.s32.totalorder %s41, 0
    %s44 = sadd.s32 %s43, 1
    %s45 = scalar_select %p42, %s43, %s44
    %p48 = pneg %p42
    %p49 = scmp.eq.s32.totalorder %s7, 1
    %p50 = por %p48, %p49
    %p51 = scmp.ne.s32.totalorder %s43, %s46
    %p52 = scmp.eq.s32.totalorder %s7, 0
    %p53 = por %p51, %p52
    %p54 = scmp.ne.s32.totalorder %s43, %s46
    %p55 = scmp.eq.s32.totalorder %s12, 1
    %p56 = por %p54, %p55
    %p57 = scmp.ne.s32.totalorder %s46, %s47
    %p58 = scmp.eq.s32.totalorder %s12, 0
    %p59 = por %p57, %p58
    %p60 = scmp.ne.s32.totalorder %s46, %s47
    %p61 = scmp.eq.s32.totalorder %s13, 1
    %p62 = por %p60, %p61
    %p64 = scmp.ne.s32.totalorder %s47, %s63
    %p65 = scmp.eq.s32.totalorder %s13, 0
    %p66 = por %p64, %p65
    %p67 = scmp.le.s32.totalorder 1, %s7
    %p68 = scmp.lt.s32.totalorder %s7, 3
    %p69 = pnand %p67, %p68
    %p70 = pneg %p69
    // Predicated region
    $region9: #{sample_convnet_forward.6} parent=5 // pred_check
      _
    $region10: #{sample_convnet_forward.6} parent=5 // pred_check_branch
      %72 = sbr.rel (%p69) target = $region12
    $region11: #{sample_convnet_forward.6} parent=5 // pred_region
      %s73 = ssub.s32 %s7, 1
    $region12: #{sample_convnet_forward.6} parent=5 // pred_fallthru
      _
    %p74 = scmp.lt.s32.totalorder %s7, 2
    // Predicated region
    $region13: #{sample_convnet_forward.6} parent=5 // pred_check
      %p75 = pneg %p74
    $region14: #{sample_convnet_forward.6} parent=5 // pred_check_branch
      %77 = sbr.rel (%p75) target = $region16
    $region15: #{sample_convnet_forward.6} parent=5 // pred_region
      // Predicated region
      $region17: #{sample_convnet_forward.6} parent=15 // pred_check
        %p78 = pneg %p27
      $region18: #{sample_convnet_forward.6} parent=15 // pred_check_branch
        %80 = sbr.rel (%p78) target = $region20
      $region19: #{sample_convnet_forward.6} parent=15 // pred_region
        %p81 = scmp.lt.s32.totalorder %s7, 1
        %s82 = scalar_select %p81, %s7, 1
        %s83 = smul.addr %s82, 28
        %s84 = smul.addr %s83, 8
        %s85 = scalar_lea.vmem %s0, %s84
      $region20: #{sample_convnet_forward.6} parent=15 // pred_fallthru
        _
    $region16: #{sample_convnet_forward.6} parent=5 // pred_fallthru
      _
    %p86 = scmp.le.s32.totalorder 1, %s7
    %p87 = scmp.lt.s32.totalorder %s7, 3
    %p88 = pnand %p86, %p87
    %p89 = pneg %p88
    // Predicated region
    $region21: #{sample_convnet_forward.6} parent=5 // pred_check
      _
    $region22: #{sample_convnet_forward.6} parent=5 // pred_check_branch
      %91 = sbr.rel (%p88) target = $region24
    $region23: #{sample_convnet_forward.6} parent=5 // pred_region
      %s92 = ssub.s32 %s7, 1
      %p93 = scmp.lt.s32.totalorder %s12, 1
      %s94 = scalar_select %p93, %s12, 1
      %s95 = smul.addr %s94, 28
      %s96 = smul.addr %s95, 8
      %s97 = scalar_lea.vmem %s0, %s96
      %p98 = pneg %p33
      %p99 = pneg %p30
      %p100 = pneg %p59
      %p101 = pneg %p56
      %p102 = scmp.lt.s32.totalorder %s12, 1
      %s103 = scalar_select %p102, %s12, 1
      %s104 = smul.addr %s103, 26
      %s105 = smul.addr %s104, 8
      %s106 = scalar_lea.vmem %s1, %s105
      %p107 = scmp.lt.s32.totalorder %s12, 1
      %s108 = scalar_select %p107, %s12, 1
      %s109 = smul.addr %s108, 28
      %s110 = smul.addr %s109, 8
      %s111 = scalar_lea.vmem %s0, %s110
      %p112 = scmp.lt.s32.totalorder %s12, 1
      %s113 = scalar_select %p112, %s12, 1
      %s114 = smul.addr %s113, 26
      %s115 = smul.addr %s114, 8
      %s116 = scalar_lea.vmem %s1, %s115
      %v117 = vld [vmem:[%s111] sm:$0xff]
      %v118 = vld [vmem:[%s111 + $0x8] sm:$0x3f]
      %v119 = vld [vmem:[%s111 + $0x10] sm:$0xff]
      %v120 = vld [vmem:[%s111 + $0x18] sm:$0x3f]
      %v121 = vld [vmem:[%s111 + $0x20] sm:$0xff]
      %v122 = vld [vmem:[%s111 + $0x28] sm:$0x3f]
      %v123 = vld [vmem:[%s111 + $0x30] sm:$0xff]
      %v124 = vld [vmem:[%s111 + $0x38] sm:$0x3f]
      %v125 = vld [vmem:[%s111 + $0x40] sm:$0xff]
      %v126 = vld [vmem:[%s111 + $0x48] sm:$0x3f]
      %v127 = vld [vmem:[%s111 + $0x50] sm:$0xff]
      %v128 = vld [vmem:[%s111 + $0x58] sm:$0x3f]
      %v129 = vld [vmem:[%s111 + $0x60] sm:$0xff]
      %v130 = vld [vmem:[%s111 + $0x68] sm:$0x3f]
      %v131 = vld [vmem:[%s111 + $0x70] sm:$0xff]
      %v132 = vld [vmem:[%s111 + $0x78] sm:$0x3f]
      %v133 = vld [vmem:[%s111 + $0x80] sm:$0xff]
      %v134 = vld [vmem:[%s111 + $0x88] sm:$0x3f]
      %v135 = vld [vmem:[%s111 + $0x90] sm:$0xff]
      %v136 = vld [vmem:[%s111 + $0x98] sm:$0x3f]
      %v137 = vld [vmem:[%s111 + $0xa0] sm:$0xff]
      %v138 = vld [vmem:[%s111 + $0xa8] sm:$0x3f]
      %v139 = vld [vmem:[%s111 + $0xb0] sm:$0xff]
      %v140 = vld [vmem:[%s111 + $0xb8] sm:$0x3f]
      %v141 = vld [vmem:[%s111 + $0xc0] sm:$0xff]
      %v142 = vld [vmem:[%s111 + $0xc8] sm:$0x3f]
      %v143 = vld [vmem:[%s111 + $0xd0] sm:$0xff]
      %v144 = vld [vmem:[%s111 + $0xd8] sm:$0x3f]
      %v145 = vmax.f32 %v117, %v119
      %v146 = vmax.f32 %v118, %v120
      %v147 = vmax.f32 %v119, %v121
      %v148 = vmax.f32 %v120, %v122
      %v149 = vmax.f32 %v121, %v123
      %v150 = vmax.f32 %v122, %v124
      %v151 = vmax.f32 %v123, %v125
      %v152 = vmax.f32 %v124, %v126
      %v153 = vmax.f32 %v125, %v127
      %v154 = vmax.f32 %v126, %v128
      %v155 = vmax.f32 %v127, %v129
      %v156 = vmax.f32 %v128, %v130
      %v157 = vmax.f32 %v129, %v131
      %v158 = vmax.f32 %v130, %v132
      %v159 = vmax.f32 %v131, %v133
      %v160 = vmax.f32 %v132, %v134
      %v161 = vmax.f32 %v133, %v135
      %v162 = vmax.f32 %v134, %v136
      %v163 = vmax.f32 %v135, %v137
      %v164 = vmax.f32 %v136, %v138
      %v165 = vmax.f32 %v137, %v139
      %v166 = vmax.f32 %v138, %v140
      %v167 = vmax.f32 %v139, %v141
      %v168 = vmax.f32 %v140, %v142
      %v169 = vmax.f32 %v141, %v143
      %v170 = vmax.f32 %v142, %v144
      %vm197 = vcmask 1046528
      %v198 = vrot.slane %v145, 1
      %v199 = vrot.slane %v146, 1
      %v200 = vsel %vm197, %v198, %v199
      %v201 = vrot.slane %v147, 1
      %v202 = vrot.slane %v148, 1
      %v203 = vsel %vm197, %v201, %v202
      %v204 = vrot.slane %v149, 1
      %v205 = vrot.slane %v150, 1
      %v206 = vsel %vm197, %v204, %v205
      %v207 = vrot.slane %v151, 1
      %v208 = vrot.slane %v152, 1
      %v209 = vsel %vm197, %v207, %v208
      %v210 = vrot.slane %v153, 1
      %v211 = vrot.slane %v154, 1
      %v212 = vsel %vm197, %v210, %v211
      %v213 = vrot.slane %v155, 1
      %v214 = vrot.slane %v156, 1
      %v215 = vsel %vm197, %v213, %v214
      %v216 = vrot.slane %v157, 1
      %v217 = vrot.slane %v158, 1
      %v218 = vsel %vm197, %v216, %v217
      %v219 = vrot.slane %v159, 1
      %v220 = vrot.slane %v160, 1
      %v221 = vsel %vm197, %v219, %v220
      %v222 = vrot.slane %v161, 1
      %v223 = vrot.slane %v162, 1
      %v224 = vsel %vm197, %v222, %v223
      %v225 = vrot.slane %v163, 1
      %v226 = vrot.slane %v164, 1
      %v227 = vsel %vm197, %v225, %v226
      %v228 = vrot.slane %v165, 1
      %v229 = vrot.slane %v166, 1
      %v230 = vsel %vm197, %v228, %v229
      %v231 = vrot.slane %v167, 1
      %v232 = vrot.slane %v168, 1
      %v233 = vsel %vm197, %v231, %v232
      %v234 = vrot.slane %v169, 1
      %v235 = vrot.slane %v170, 1
      %v236 = vsel %vm197, %v234, %v235
      %v263 = vmax.f32 %v145, %v200
      %v264 = vmax.f32 %v146, %v199
      %v265 = vmax.f32 %v147, %v203
      %v266 = vmax.f32 %v148, %v202
      %v267 = vmax.f32 %v149, %v206
      %v268 = vmax.f32 %v150, %v205
      %v269 = vmax.f32 %v151, %v209
      %v270 = vmax.f32 %v152, %v208
      %v271 = vmax.f32 %v153, %v212
      %v272 = vmax.f32 %v154, %v211
      %v273 = vmax.f32 %v155, %v215
      %v274 = vmax.f32 %v156, %v214
      %v275 = vmax.f32 %v157, %v218
      %v276 = vmax.f32 %v158, %v217
      %v277 = vmax.f32 %v159, %v221
      %v278 = vmax.f32 %v160, %v220
      %v279 = vmax.f32 %v161, %v224
      %v280 = vmax.f32 %v162, %v223
      %v281 = vmax.f32 %v163, %v227
      %v282 = vmax.f32 %v164, %v226
      %v283 = vmax.f32 %v165, %v230
      %v284 = vmax.f32 %v166, %v229
      %v285 = vmax.f32 %v167, %v233
      %v286 = vmax.f32 %v168, %v232
      %v287 = vmax.f32 %v169, %v236
      %v288 = vmax.f32 %v170, %v235
      %vm289 = vcmask 130048
      %290 = vst.msk [vmem:[%s116] sm:$0xff] %vm289, %v263
      %vm291 = vcmask 126976
      %292 = vst.msk [vmem:[%s116 + $0x8] sm:$0x1f] %vm291, %v264
      %293 = vst.msk [vmem:[%s116 + $0x10] sm:$0xff] %vm289, %v265
      %294 = vst.msk [vmem:[%s116 + $0x18] sm:$0x1f] %vm291, %v266
      %295 = vst.msk [vmem:[%s116 + $0x20] sm:$0xff] %vm289, %v267
      %296 = vst.msk [vmem:[%s116 + $0x28] sm:$0x1f] %vm291, %v268
      %297 = vst.msk [vmem:[%s116 + $0x30] sm:$0xff] %vm289, %v269
      %298 = vst.msk [vmem:[%s116 + $0x38] sm:$0x1f] %vm291, %v270
      %299 = vst.msk [vmem:[%s116 + $0x40] sm:$0xff] %vm289, %v271
      %300 = vst.msk [vmem:[%s116 + $0x48] sm:$0x1f] %vm291, %v272
      %301 = vst.msk [vmem:[%s116 + $0x50] sm:$0xff] %vm289, %v273
      %302 = vst.msk [vmem:[%s116 + $0x58] sm:$0x1f] %vm291, %v274
      %303 = vst.msk [vmem:[%s116 + $0x60] sm:$0xff] %vm289, %v275
      %304 = vst.msk [vmem:[%s116 + $0x68] sm:$0x1f] %vm291, %v276
      %305 = vst.msk [vmem:[%s116 + $0x70] sm:$0xff] %vm289, %v277
      %306 = vst.msk [vmem:[%s116 + $0x78] sm:$0x1f] %vm291, %v278
      %307 = vst.msk [vmem:[%s116 + $0x80] sm:$0xff] %vm289, %v279
      %308 = vst.msk [vmem:[%s116 + $0x88] sm:$0x1f] %vm291, %v280
      %309 = vst.msk [vmem:[%s116 + $0x90] sm:$0xff] %vm289, %v281
      %310 = vst.msk [vmem:[%s116 + $0x98] sm:$0x1f] %vm291, %v282
      %311 = vst.msk [vmem:[%s116 + $0xa0] sm:$0xff] %vm289, %v283
      %312 = vst.msk [vmem:[%s116 + $0xa8] sm:$0x1f] %vm291, %v284
      %313 = vst.msk [vmem:[%s116 + $0xb0] sm:$0xff] %vm289, %v285
      %314 = vst.msk [vmem:[%s116 + $0xb8] sm:$0x1f] %vm291, %v286
      %315 = vst.msk [vmem:[%s116 + $0xc0] sm:$0xff] %vm289, %v287
      %316 = vst.msk [vmem:[%s116 + $0xc8] sm:$0x1f] %vm291, %v288
      %p317 = scmp.lt.s32.totalorder %s12, 1
      %s318 = scalar_select %p317, %s12, 1
      %s319 = smul.addr %s318, 26
      %s320 = smul.addr %s319, 8
      %s321 = scalar_lea.vmem %s1, %s320
      // Predicated region
      $region25: #{sample_convnet_forward.6} parent=23 // pred_check
        %p322 = pneg %p56
      $region26: #{sample_convnet_forward.6} parent=23 // pred_check_branch
        %324 = sbr.rel (%p322) target = $region28
      $region27: #{sample_convnet_forward.6} parent=23 // pred_region
        _
      $region28: #{sample_convnet_forward.6} parent=23 // pred_fallthru
        _
    $region24: #{sample_convnet_forward.6} parent=5 // pred_fallthru
      _
    %p325 = scmp.le.s32.totalorder 2, %s7
    // Predicated region
    $region29: #{sample_convnet_forward.6} parent=5 // pred_check
      %p326 = pneg %p325
    $region30: #{sample_convnet_forward.6} parent=5 // pred_check_branch
      %328 = sbr.rel (%p326) target = $region32
    $region31: #{sample_convnet_forward.6} parent=5 // pred_region
      %s329 = ssub.s32 %s7, 2
      // Predicated region
      $region33: #{sample_convnet_forward.6} parent=31 // pred_check
        %p330 = pneg %p62
      $region34: #{sample_convnet_forward.6} parent=31 // pred_check_branch
        %332 = sbr.rel (%p330) target = $region36
      $region35: #{sample_convnet_forward.6} parent=31 // pred_region
        %p333 = scmp.lt.s32.totalorder %s13, 1
        %s334 = scalar_select %p333, %s13, 1
        %s335 = smul.addr %s334, 26
        %s336 = smul.addr %s335, 8
        %s337 = scalar_lea.vmem %s1, %s336
      $region36: #{sample_convnet_forward.6} parent=31 // pred_fallthru
        _
    $region32: #{sample_convnet_forward.6} parent=5 // pred_fallthru
      _
  $region6: #{sample_convnet_forward.6} parent=0 // loop_footer
    %s11 = sadd.s32 1, %s7
  $region7: #{sample_convnet_forward.6} parent=0 // loop_footer_branch
    %6 = sbr.rel target = $region3
  $region8: #{sample_convnet_forward.6} parent=0 // loop_exit
    _

// kernel: sample_convnet_forward.5
$region0: #{sample_convnet_forward.5}
  #allocation0 [shape = 'u32[]', space=smem, size = 0x4, offset = 0x4, fixed_abs, tag = 'smem constant byte address 0x4 - core index']
  #allocation1 [shape = 'u32[72,128]{1,0:T(1,128)}', space=vmem, size = 0x9000, scoped, tag = 'internal scratch']
  %s0 = inlined_call_operand.vmem [shape: bf16[400,64], index: 0, kind: input, shape index: {}]
  %s1 = inlined_call_operand.vmem [shape: bf16[64,16], index: 1, kind: input, shape index: {}]
  %s2 = inlined_call_operand.vmem [shape: f32[1,16], index: 2, kind: input, shape index: {}]
  %s3 = inlined_call_operand.vmem [shape: f32[400,16], index: 3, kind: output, shape index: {}]
  %s4 = sld [smem:[#allocation0]]
  $region45: #{sample_convnet_forward.5} parent=0
    _
  %s6 = ssub.s32 1, %s4
  %s7 = scalar_select 0, %s6, %s4
  loop: start=0, step=1, limit=4
  $region2: #{sample_convnet_forward.5} parent=0 // loop_pre_header
    _
  $region3: #{sample_convnet_forward.5} parent=0 // loop_header
    %s9 = sphi 0, %s13
    %p10 = scmp.ge.s32.totalorder %s9, 4
    %s19 = sphi 0, %s21
    %s22 = sphi 0, %s19
    %s23 = sphi 0, %s22
    %s39 = sphi 0, %s23
    %s43 = sphi 0, %s43
    %s45 = sphi 0, %s43
    %s46 = sphi 0, %s45
    %s60 = sphi 0, %s46
    %s64 = sphi 0, %s64
    %s66 = sphi 0, %s64
    %s67 = sphi 0, %s66
    %s81 = sphi 0, %s67
    %s87 = sphi 0, %s89
    %s90 = sphi 0, %s87
    %s91 = sphi 0, %s90
    %s107 = sphi 0, %s91
  $region4: #{sample_convnet_forward.5} parent=0 // loop_header_branch
    %12 = sbr.rel (%p10) target = $region8
  $region5: #{sample_convnet_forward.5} parent=0 // loop_body
    %s14 = ssub.s32 %s9, 1
    %s15 = ssub.s32 %s9, 2
    %s16 = sadd.s32 %s9, 1
    %s17 = ssub.s32 %s9, %s16
    %p18 = scmp.eq.s32.totalorder %s17, 0
    %s20 = sadd.s32 %s19, 1
    %s21 = scalar_select %p18, %s19, %s20
    %p24 = pneg %p18
    %p25 = scmp.eq.s32.totalorder %s9, 1
    %p26 = por %p24, %p25
    %p27 = scmp.ne.s32.totalorder %s19, %s22
    %p28 = scmp.eq.s32.totalorder %s9, 0
    %p29 = por %p27, %p28
    %p30 = scmp.ne.s32.totalorder %s19, %s22
    %p31 = scmp.eq.s32.totalorder %s14, 1
    %p32 = por %p30, %p31
    %p33 = scmp.ne.s32.totalorder %s22, %s23
    %p34 = scmp.eq.s32.totalorder %s14, 0
    %p35 = por %p33, %p34
    %p36 = scmp.ne.s32.totalorder %s22, %s23
    %p37 = scmp.eq.s32.totalorder %s15, 1
    %p38 = por %p36, %p37
    %p40 = scmp.ne.s32.totalorder %s23, %s39
    %p41 = scmp.eq.s32.totalorder %s15, 0
    %p42 = por %p40, %p41
    %s44 = sadd.s32 %s43, 1
    %p47 = scmp.eq.s32.totalorder %s9, 1
    %p48 = scmp.ne.s32.totalorder %s43, %s45
    %p49 = scmp.eq.s32.totalorder %s9, 0
    %p50 = por %p48, %p49
    %p51 = scmp.ne.s32.totalorder %s43, %s45
    %p52 = scmp.eq.s32.totalorder %s14, 1
    %p53 = por %p51, %p52
    %p54 = scmp.ne.s32.totalorder %s45, %s46
    %p55 = scmp.eq.s32.totalorder %s14, 0
    %p56 = por %p54, %p55
    %p57 = scmp.ne.s32.totalorder %s45, %s46
    %p58 = scmp.eq.s32.totalorder %s15, 1
    %p59 = por %p57, %p58
    %p61 = scmp.ne.s32.totalorder %s46, %s60
    %p62 = scmp.eq.s32.totalorder %s15, 0
    %p63 = por %p61, %p62
    %s65 = sadd.s32 %s64, 1
    %p68 = scmp.eq.s32.totalorder %s9, 1
    %p69 = scmp.ne.s32.totalorder %s64, %s66
    %p70 = scmp.eq.s32.totalorder %s9, 0
    %p71 = por %p69, %p70
    %p72 = scmp.ne.s32.totalorder %s64, %s66
    %p73 = scmp.eq.s32.totalorder %s14, 1
    %p74 = por %p72, %p73
    %p75 = scmp.ne.s32.totalorder %s66, %s67
    %p76 = scmp.eq.s32.totalorder %s14, 0
    %p77 = por %p75, %p76
    %p78 = scmp.ne.s32.totalorder %s66, %s67
    %p79 = scmp.eq.s32.totalorder %s15, 1
    %p80 = por %p78, %p79
    %p82 = scmp.ne.s32.totalorder %s67, %s81
    %p83 = scmp.eq.s32.totalorder %s15, 0
    %p84 = por %p82, %p83
    %s85 = ssub.s32 %s9, %s16
    %p86 = scmp.eq.s32.totalorder %s85, 0
    %s88 = sadd.s32 %s87, 1
    %s89 = scalar_select %p86, %s87, %s88
    %p92 = pneg %p86
    %p93 = scmp.eq.s32.totalorder %s9, 1
    %p94 = por %p92, %p93
    %p95 = scmp.ne.s32.totalorder %s87, %s90
    %p96 = scmp.eq.s32.totalorder %s9, 0
    %p97 = por %p95, %p96
    %p98 = scmp.ne.s32.totalorder %s87, %s90
    %p99 = scmp.eq.s32.totalorder %s14, 1
    %p100 = por %p98, %p99
    %p101 = scmp.ne.s32.totalorder %s90, %s91
    %p102 = scmp.eq.s32.totalorder %s14, 0
    %p103 = por %p101, %p102
    %p104 = scmp.ne.s32.totalorder %s90, %s91
    %p105 = scmp.eq.s32.totalorder %s15, 1
    %p106 = por %p104, %p105
    %p108 = scmp.ne.s32.totalorder %s91, %s107
    %p109 = scmp.eq.s32.totalorder %s15, 0
    %p110 = por %p108, %p109
    %p111 = scmp.le.s32.totalorder 1, %s9
    %p112 = scmp.lt.s32.totalorder %s9, 3
    %p113 = pnand %p111, %p112
    %p114 = pneg %p113
    // Predicated region
    $region9: #{sample_convnet_forward.5} parent=5 // pred_check
      _
    $region10: #{sample_convnet_forward.5} parent=5 // pred_check_branch
      %116 = sbr.rel (%p113) target = $region12
    $region11: #{sample_convnet_forward.5} parent=5 // pred_region
      %s117 = ssub.s32 %s9, 1
      // Predicated region
      $region13: #{sample_convnet_forward.5} parent=11 // pred_check
        %p118 = pneg %p56
      $region14: #{sample_convnet_forward.5} parent=11 // pred_check_branch
        %120 = sbr.rel (%p118) target = $region16
      $region15: #{sample_convnet_forward.5} parent=11 // pred_region
        _
      $region16: #{sample_convnet_forward.5} parent=11 // pred_fallthru
        _
      // Predicated region
      $region17: #{sample_convnet_forward.5} parent=11 // pred_check
        %p121 = pneg %p77
      $region18: #{sample_convnet_forward.5} parent=11 // pred_check_branch
        %123 = sbr.rel (%p121) target = $region20
      $region19: #{sample_convnet_forward.5} parent=11 // pred_region
        _
      $region20: #{sample_convnet_forward.5} parent=11 // pred_fallthru
        _
    $region12: #{sample_convnet_forward.5} parent=5 // pred_fallthru
      _
    %p124 = scmp.lt.s32.totalorder %s9, 2
    // Predicated region
    $region21: #{sample_convnet_forward.5} parent=5 // pred_check
      %p125 = pneg %p124
    $region22: #{sample_convnet_forward.5} parent=5 // pred_check_branch
      %127 = sbr.rel (%p125) target = $region24
    $region23: #{sample_convnet_forward.5} parent=5 // pred_region
      // Predicated region
      $region25: #{sample_convnet_forward.5} parent=23 // pred_check
        %p128 = pneg %p29
      $region26: #{sample_convnet_forward.5} parent=23 // pred_check_branch
        %130 = sbr.rel (%p128) target = $region28
      $region27: #{sample_convnet_forward.5} parent=23 // pred_region
        %s131 = smul.u32 25, %s9
        %p132 = scmp.lt.s32.totalorder %s131, 49
        %s133 = scalar_select %p132, %s131, 49
        %s134 = smul.addr %s133, 4
        %s135 = scalar_lea.vmem %s0, %s134
        %s136 = smul.u32 25, %s9
      $region28: #{sample_convnet_forward.5} parent=23 // pred_fallthru
        _
    $region24: #{sample_convnet_forward.5} parent=5 // pred_fallthru
      _
    %p137 = scmp.le.s32.totalorder 1, %s9
    %p138 = scmp.lt.s32.totalorder %s9, 3
    %p139 = pnand %p137, %p138
    %p140 = pneg %p139
    // Predicated region
    $region29: #{sample_convnet_forward.5} parent=5 // pred_check
      _
    $region30: #{sample_convnet_forward.5} parent=5 // pred_check_branch
      %142 = sbr.rel (%p139) target = $region32
    $region31: #{sample_convnet_forward.5} parent=5 // pred_region
      %s143 = ssub.s32 %s9, 1
      %s144 = smul.u32 25, %s14
      %p145 = scmp.lt.s32.totalorder %s144, 49
      %s146 = scalar_select %p145, %s144, 49
      %s147 = smul.addr %s146, 4
      %s148 = scalar_lea.vmem %s0, %s147
      %p149 = pneg %p35
      %p150 = pneg %p32
      %p151 = pneg %p56
      %p152 = pneg %p53
      %p153 = pneg %p77
      %p154 = pneg %p74
      %p155 = pneg %p103
      %p156 = pneg %p100
      %s157 = smul.u32 25, %s14
      %p158 = scmp.lt.s32.totalorder %s157, 49
      %s159 = scalar_select %p158, %s157, 49
      %s160 = smul.addr %s159, 8
      %s161 = scalar_lea.vmem %s3, %s160
      %s162 = smul.u32 25, %s14
      %p163 = scmp.lt.s32.totalorder %s162, 49
      %s164 = scalar_select %p163, %s162, 49
      %s165 = smul.addr %s164, 4
      %s166 = scalar_lea.vmem %s0, %s165
      %s167 = smul.u32 25, %s14
      %s168 = smul.u32 25, %s14
      %p169 = scmp.lt.s32.totalorder %s168, 49
      %s170 = scalar_select %p169, %s168, 49
      %s171 = smul.addr %s170, 8
      %s172 = scalar_lea.vmem %s3, %s171
      %s173 = smul.u32 25, %s14
      %v175 = vld [vmem:[%s166] sm:$0xf]
      %v176 = vld [vmem:[%s166 + $0x4] sm:$0xf]
      %v177 = vld [vmem:[%s166 + $0x8] sm:$0xf]
      %v178 = vld [vmem:[%s166 + $0xc] sm:$0xf]
      %v179 = vld [vmem:[%s166 + $0x10] sm:$0xf]
      %v180 = vld [vmem:[%s166 + $0x14] sm:$0xf]
      %v181 = vld [vmem:[%s166 + $0x18] sm:$0xf]
      %v182 = vld [vmem:[%s166 + $0x1c] sm:$0xf]
      %v183 = vld [vmem:[%s166 + $0x20] sm:$0xf]
      %v184 = vld [vmem:[%s166 + $0x24] sm:$0xf]
      %v185 = vld [vmem:[%s166 + $0x28] sm:$0xf]
      %v186 = vld [vmem:[%s166 + $0x2c] sm:$0xf]
      %v187 = vld [vmem:[%s166 + $0x30] sm:$0xf]
      %v188 = vld [vmem:[%s166 + $0x34] sm:$0xf]
      %v189 = vld [vmem:[%s166 + $0x38] sm:$0xf]
      %v190 = vld [vmem:[%s166 + $0x3c] sm:$0xf]
      %v191 = vld [vmem:[%s166 + $0x40] sm:$0xf]
      %v192 = vld [vmem:[%s166 + $0x44] sm:$0xf]
      %v193 = vld [vmem:[%s166 + $0x48] sm:$0xf]
      %v194 = vld [vmem:[%s166 + $0x4c] sm:$0xf]
      %v195 = vld [vmem:[%s166 + $0x50] sm:$0xf]
      %v196 = vld [vmem:[%s166 + $0x54] sm:$0xf]
      %v197 = vld [vmem:[%s166 + $0x58] sm:$0xf]
      %v198 = vld [vmem:[%s166 + $0x5c] sm:$0xf]
      %v199 = vld [vmem:[%s166 + $0x60] sm:$0xf]
      %v200 = vld [vmem:[%s1] sm:$0xf]
      %v201 = vld [vmem:[%s1 + $0x4] sm:$0xf]
      %v202 = vld [vmem:[%s1 + $0x8] sm:$0xf]
      %v203 = vld [vmem:[%s1 + $0xc] sm:$0xf]
      %v204 = vld [vmem:[%s1 + $0x10] sm:$0xf]
      %v205 = vld [vmem:[%s1 + $0x14] sm:$0xf]
      %v206 = vld [vmem:[%s1 + $0x18] sm:$0xf]
      %v207 = vld [vmem:[%s1 + $0x1c] sm:$0xf]
      %v208 = vld [vmem:[%s2] sm:$0x1]
      %v210 = vperm.slane %v208, 0
      %v237 = vunpack.c.l.b16 %v175
      %v238 = vunpack.c.l.b16 %v176
      %v239 = vunpack.c.l.b16 %v177
      %v240 = vunpack.c.l.b16 %v178
      %v241 = vunpack.c.l.b16 %v179
      %v242 = vunpack.c.l.b16 %v180
      %v243 = vunpack.c.l.b16 %v181
      %v244 = vunpack.c.l.b16 %v182
      %v245 = vunpack.c.l.b16 %v183
      %v246 = vunpack.c.l.b16 %v184
      %v247 = vunpack.c.l.b16 %v185
      %v248 = vunpack.c.l.b16 %v186
      %v249 = vunpack.c.l.b16 %v187
      %v250 = vunpack.c.l.b16 %v188
      %v251 = vunpack.c.l.b16 %v189
      %v252 = vunpack.c.l.b16 %v190
      %v253 = vunpack.c.l.b16 %v191
      %v254 = vunpack.c.l.b16 %v192
      %v255 = vunpack.c.l.b16 %v193
      %v256 = vunpack.c.l.b16 %v194
      %v257 = vunpack.c.l.b16 %v195
      %v258 = vunpack.c.l.b16 %v196
      %v259 = vunpack.c.l.b16 %v197
      %v260 = vunpack.c.l.b16 %v198
      %v261 = vunpack.c.l.b16 %v199
      %v262 = vpack.c.b16 %v238, %v237
      %v263 = vpack.c.b16 %v240, %v239
      %v264 = vpack.c.b16 %v242, %v241
      %v265 = vpack.c.b16 %v244, %v243
      %v266 = vpack.c.b16 %v246, %v245
      %v267 = vpack.c.b16 %v248, %v247
      %v268 = vpack.c.b16 %v250, %v249
      %v269 = vpack.c.b16 %v252, %v251
      %v270 = vpack.c.b16 %v254, %v253
      %v271 = vpack.c.b16 %v256, %v255
      %v272 = vpack.c.b16 %v258, %v257
      %v273 = vpack.c.b16 %v260, %v259
      %v274 = vpack.c.b16 %v261, %v261
      %v283 = vunpack.c.l.b16 %v200
      %v284 = vunpack.c.l.b16 %v201
      %v285 = vunpack.c.l.b16 %v202
      %v286 = vunpack.c.l.b16 %v203
      %v287 = vunpack.c.l.b16 %v204
      %v288 = vunpack.c.l.b16 %v205
      %v289 = vunpack.c.l.b16 %v206
      %v290 = vunpack.c.l.b16 %v207
      %v291 = vpack.c.b16 %v284, %v283
      %v292 = vpack.c.b16 %v286, %v285
      %v293 = vpack.c.b16 %v288, %v287
      %v294 = vpack.c.b16 %v290, %v289
      %vm299 = vcmask 523264
      %v301 = vsel %vm299, %v262, 0
      %v304 = vsel %vm299, %v263, 0
      %v307 = vsel %vm299, %v264, 0
      %v310 = vsel %vm299, %v265, 0
      %v313 = vsel %vm299, %v266, 0
      %v316 = vsel %vm299, %v267, 0
      %v319 = vsel %vm299, %v268, 0
      %v322 = vsel %vm299, %v269, 0
      %v325 = vsel %vm299, %v270, 0
      %v328 = vsel %vm299, %v271, 0
      %v331 = vsel %vm299, %v272, 0
      %v334 = vsel %vm299, %v273, 0
      %v337 = vsel %vm299, %v274, 0
      %339 = vmatpush.bf16.msra.mxu0 0
      %340 = vmatpush.bf16.msra.mxu0 0
      %341 = vmatpush.bf16.msra.mxu0 0
      %342 = vmatpush.bf16.msra.mxu0 0
      %343 = vmatpush.bf16.msra.mxu0 %v294
      %344 = vmatpush.bf16.msra.mxu0 %v293
      %345 = vmatpush.bf16.msra.mxu0 %v292
      %346 = vmatpush.bf16.msra.mxu0 %v291
      %347 = vmatmul.bf16.gmra.mxu0 %v301
      %v348 = vpop.f32.mrf.mxu0
      %v349 = vadd.f32 %v210, %v348
      %v350 = vpop.f32.mrf.mxu0
      %v351 = vadd.f32 %v210, %v350
      %352 = vmatmul.bf16.gmra.mxu0 %v304
      %v353 = vpop.f32.mrf.mxu0
      %v354 = vadd.f32 %v210, %v353
      %v355 = vpop.f32.mrf.mxu0
      %v356 = vadd.f32 %v210, %v355
      %357 = vmatmul.bf16.gmra.mxu0 %v307
      %v358 = vpop.f32.mrf.mxu0
      %v359 = vadd.f32 %v210, %v358
      %v360 = vpop.f32.mrf.mxu0
      %v361 = vadd.f32 %v210, %v360
      %362 = vmatmul.bf16.gmra.mxu0 %v310
      %v363 = vpop.f32.mrf.mxu0
      %v364 = vadd.f32 %v210, %v363
      %v365 = vpop.f32.mrf.mxu0
      %v366 = vadd.f32 %v210, %v365
      %367 = vmatmul.bf16.gmra.mxu0 %v313
      %v368 = vpop.f32.mrf.mxu0
      %v369 = vadd.f32 %v210, %v368
      %v370 = vpop.f32.mrf.mxu0
      %v371 = vadd.f32 %v210, %v370
      %372 = vmatmul.bf16.gmra.mxu0 %v316
      %v373 = vpop.f32.mrf.mxu0
      %v374 = vadd.f32 %v210, %v373
      %v375 = vpop.f32.mrf.mxu0
      %v376 = vadd.f32 %v210, %v375
      %377 = vmatmul.bf16.gmra.mxu0 %v319
      %v378 = vpop.f32.mrf.mxu0
      %v379 = vadd.f32 %v210, %v378
      %v380 = vpop.f32.mrf.mxu0
      %v381 = vadd.f32 %v210, %v380
      %382 = vmatmul.bf16.gmra.mxu0 %v322
      %v383 = vpop.f32.mrf.mxu0
      %v384 = vadd.f32 %v210, %v383
      %v385 = vpop.f32.mrf.mxu0
      %v386 = vadd.f32 %v210, %v385
      %387 = vmatmul.bf16.gmra.mxu0 %v325
      %v388 = vpop.f32.mrf.mxu0
      %v389 = vadd.f32 %v210, %v388
      %v390 = vpop.f32.mrf.mxu0
      %v391 = vadd.f32 %v210, %v390
      %392 = vmatmul.bf16.gmra.mxu0 %v328
      %v393 = vpop.f32.mrf.mxu0
      %v394 = vadd.f32 %v210, %v393
      %v395 = vpop.f32.mrf.mxu0
      %v396 = vadd.f32 %v210, %v395
      %397 = vmatmul.bf16.gmra.mxu0 %v331
      %v398 = vpop.f32.mrf.mxu0
      %v399 = vadd.f32 %v210, %v398
      %v400 = vpop.f32.mrf.mxu0
      %v401 = vadd.f32 %v210, %v400
      %402 = vmatmul.bf16.gmra.mxu0 %v334
      %v403 = vpop.f32.mrf.mxu0
      %v404 = vadd.f32 %v210, %v403
      %v405 = vpop.f32.mrf.mxu0
      %v406 = vadd.f32 %v210, %v405
      %407 = vmatmul.bf16.gmra.mxu0 %v337
      %v408 = vpop.f32.mrf.mxu0
      %v409 = vadd.f32 %v210, %v408
      %v410 = vpop.f32.mrf.mxu0
      %411 = vdwg.mxu0
      %v412 = vmax.f32 %v349, 0.0
      %v413 = vmax.f32 %v351, 0.0
      %v414 = vmax.f32 %v354, 0.0
      %v415 = vmax.f32 %v356, 0.0
      %v416 = vmax.f32 %v359, 0.0
      %v417 = vmax.f32 %v361, 0.0
      %v418 = vmax.f32 %v364, 0.0
      %v419 = vmax.f32 %v366, 0.0
      %v420 = vmax.f32 %v369, 0.0
      %v421 = vmax.f32 %v371, 0.0
      %v422 = vmax.f32 %v374, 0.0
      %v423 = vmax.f32 %v376, 0.0
      %v424 = vmax.f32 %v379, 0.0
      %v425 = vmax.f32 %v381, 0.0
      %v426 = vmax.f32 %v384, 0.0
      %v427 = vmax.f32 %v386, 0.0
      %v428 = vmax.f32 %v389, 0.0
      %v429 = vmax.f32 %v391, 0.0
      %v430 = vmax.f32 %v394, 0.0
      %v431 = vmax.f32 %v396, 0.0
      %v432 = vmax.f32 %v399, 0.0
      %v433 = vmax.f32 %v401, 0.0
      %v434 = vmax.f32 %v404, 0.0
      %v435 = vmax.f32 %v406, 0.0
      %v436 = vmax.f32 %v409, 0.0
      %vm437 = vcmask 130048
      %438 = vst.msk [vmem:[%s172] sm:$0xff] %vm437, %v412
      %439 = vst.msk [vmem:[%s172 + $0x8] sm:$0xff] %vm437, %v413
      %440 = vst.msk [vmem:[%s172 + $0x10] sm:$0xff] %vm437, %v414
      %441 = vst.msk [vmem:[%s172 + $0x18] sm:$0xff] %vm437, %v415
      %442 = vst.msk [vmem:[%s172 + $0x20] sm:$0xff] %vm437, %v416
      %443 = vst.msk [vmem:[%s172 + $0x28] sm:$0xff] %vm437, %v417
      %444 = vst.msk [vmem:[%s172 + $0x30] sm:$0xff] %vm437, %v418
      %445 = vst.msk [vmem:[%s172 + $0x38] sm:$0xff] %vm437, %v419
      %446 = vst.msk [vmem:[%s172 + $0x40] sm:$0xff] %vm437, %v420
      %447 = vst.msk [vmem:[%s172 + $0x48] sm:$0xff] %vm437, %v421
      %448 = vst.msk [vmem:[%s172 + $0x50] sm:$0xff] %vm437, %v422
      %449 = vst.msk [vmem:[%s172 + $0x58] sm:$0xff] %vm437, %v423
      %450 = vst.msk [vmem:[%s172 + $0x60] sm:$0xff] %vm437, %v424
      %451 = vst.msk [vmem:[%s172 + $0x68] sm:$0xff] %vm437, %v425
      %452 = vst.msk [vmem:[%s172 + $0x70] sm:$0xff] %vm437, %v426
      %453 = vst.msk [vmem:[%s172 + $0x78] sm:$0xff] %vm437, %v427
      %454 = vst.msk [vmem:[%s172 + $0x80] sm:$0xff] %vm437, %v428
      %455 = vst.msk [vmem:[%s172 + $0x88] sm:$0xff] %vm437, %v429
      %456 = vst.msk [vmem:[%s172 + $0x90] sm:$0xff] %vm437, %v430
      %457 = vst.msk [vmem:[%s172 + $0x98] sm:$0xff] %vm437, %v431
      %458 = vst.msk [vmem:[%s172 + $0xa0] sm:$0xff] %vm437, %v432
      %459 = vst.msk [vmem:[%s172 + $0xa8] sm:$0xff] %vm437, %v433
      %460 = vst.msk [vmem:[%s172 + $0xb0] sm:$0xff] %vm437, %v434
      %461 = vst.msk [vmem:[%s172 + $0xb8] sm:$0xff] %vm437, %v435
      %462 = vst.msk [vmem:[%s172 + $0xc0] sm:$0xff] %vm437, %v436
      %s463 = smul.u32 25, %s14
      %p464 = scmp.lt.s32.totalorder %s463, 49
      %s465 = scalar_select %p464, %s463, 49
      %s466 = smul.addr %s465, 8
      %s467 = scalar_lea.vmem %s3, %s466
      // Predicated region
      $region33: #{sample_convnet_forward.5} parent=31 // pred_check
        %p468 = pneg %p100
      $region34: #{sample_convnet_forward.5} parent=31 // pred_check_branch
        %470 = sbr.rel (%p468) target = $region36
      $region35: #{sample_convnet_forward.5} parent=31 // pred_region
        %s471 = smul.u32 25, %s14
      $region36: #{sample_convnet_forward.5} parent=31 // pred_fallthru
        _
    $region32: #{sample_convnet_forward.5} parent=5 // pred_fallthru
      _
    %p472 = scmp.le.s32.totalorder 2, %s9
    // Predicated region
    $region37: #{sample_convnet_forward.5} parent=5 // pred_check
      %p473 = pneg %p472
    $region38: #{sample_convnet_forward.5} parent=5 // pred_check_branch
      %475 = sbr.rel (%p473) target = $region40
    $region39: #{sample_convnet_forward.5} parent=5 // pred_region
      %s476 = ssub.s32 %s9, 2
      // Predicated region
      $region41: #{sample_convnet_forward.5} parent=39 // pred_check
        %p477 = pneg %p106
      $region42: #{sample_convnet_forward.5} parent=39 // pred_check_branch
        %479 = sbr.rel (%p477) target = $region44
      $region43: #{sample_convnet_forward.5} parent=39 // pred_region
        %s480 = smul.u32 25, %s15
        %p481 = scmp.lt.s32.totalorder %s480, 49
        %s482 = scalar_select %p481, %s480, 49
        %s483 = smul.addr %s482, 8
        %s484 = scalar_lea.vmem %s3, %s483
      $region44: #{sample_convnet_forward.5} parent=39 // pred_fallthru
        _
    $region40: #{sample_convnet_forward.5} parent=5 // pred_fallthru
      _
  $region6: #{sample_convnet_forward.5} parent=0 // loop_footer
    %s13 = sadd.s32 1, %s9
  $region7: #{sample_convnet_forward.5} parent=0 // loop_footer_branch
    %8 = sbr.rel target = $region3
  $region8: #{sample_convnet_forward.5} parent=0 // loop_exit
    _

// kernel: sample_convnet_forward.7
$region0: #{sample_convnet_forward.7}
  #allocation0 [shape = 'u32[]', space=smem, size = 0x4, offset = 0x4, fixed_abs, tag = 'smem constant byte address 0x4 - core index']
  #allocation1 [shape = 'u32[72,128]{1,0:T(1,128)}', space=vmem, size = 0x9000, scoped, tag = 'internal scratch']
  %s0 = inlined_call_operand.vmem [shape: bf16[64,256], index: 0, kind: input, shape index: {}]
  %s1 = inlined_call_operand.vmem [shape: bf16[256,32], index: 1, kind: input, shape index: {}]
  %s2 = inlined_call_operand.vmem [shape: f32[1,32], index: 2, kind: input, shape index: {}]
  %s3 = inlined_call_operand.vmem [shape: f32[64,32], index: 3, kind: output, shape index: {}]
  %s4 = sld [smem:[#allocation0]]
  $region45: #{sample_convnet_forward.7} parent=0
    _
  %s6 = ssub.s32 1, %s4
  %s7 = scalar_select 0, %s6, %s4
  loop: start=0, step=1, limit=4
  $region2: #{sample_convnet_forward.7} parent=0 // loop_pre_header
    _
  $region3: #{sample_convnet_forward.7} parent=0 // loop_header
    %s9 = sphi 0, %s13
    %p10 = scmp.ge.s32.totalorder %s9, 4
    %s19 = sphi 0, %s21
    %s22 = sphi 0, %s19
    %s23 = sphi 0, %s22
    %s39 = sphi 0, %s23
    %s43 = sphi 0, %s43
    %s45 = sphi 0, %s43
    %s46 = sphi 0, %s45
    %s60 = sphi 0, %s46
    %s64 = sphi 0, %s64
    %s66 = sphi 0, %s64
    %s67 = sphi 0, %s66
    %s81 = sphi 0, %s67
    %s87 = sphi 0, %s89
    %s90 = sphi 0, %s87
    %s91 = sphi 0, %s90
    %s107 = sphi 0, %s91
  $region4: #{sample_convnet_forward.7} parent=0 // loop_header_branch
    %12 = sbr.rel (%p10) target = $region8
  $region5: #{sample_convnet_forward.7} parent=0 // loop_body
    %s14 = ssub.s32 %s9, 1
    %s15 = ssub.s32 %s9, 2
    %s16 = sadd.s32 %s9, 1
    %s17 = ssub.s32 %s9, %s16
    %p18 = scmp.eq.s32.totalorder %s17, 0
    %s20 = sadd.s32 %s19, 1
    %s21 = scalar_select %p18, %s19, %s20
    %p24 = pneg %p18
    %p25 = scmp.eq.s32.totalorder %s9, 1
    %p26 = por %p24, %p25
    %p27 = scmp.ne.s32.totalorder %s19, %s22
    %p28 = scmp.eq.s32.totalorder %s9, 0
    %p29 = por %p27, %p28
    %p30 = scmp.ne.s32.totalorder %s19, %s22
    %p31 = scmp.eq.s32.totalorder %s14, 1
    %p32 = por %p30, %p31
    %p33 = scmp.ne.s32.totalorder %s22, %s23
    %p34 = scmp.eq.s32.totalorder %s14, 0
    %p35 = por %p33, %p34
    %p36 = scmp.ne.s32.totalorder %s22, %s23
    %p37 = scmp.eq.s32.totalorder %s15, 1
    %p38 = por %p36, %p37
    %p40 = scmp.ne.s32.totalorder %s23, %s39
    %p41 = scmp.eq.s32.totalorder %s15, 0
    %p42 = por %p40, %p41
    %s44 = sadd.s32 %s43, 1
    %p47 = scmp.eq.s32.totalorder %s9, 1
    %p48 = scmp.ne.s32.totalorder %s43, %s45
    %p49 = scmp.eq.s32.totalorder %s9, 0
    %p50 = por %p48, %p49
    %p51 = scmp.ne.s32.totalorder %s43, %s45
    %p52 = scmp.eq.s32.totalorder %s14, 1
    %p53 = por %p51, %p52
    %p54 = scmp.ne.s32.totalorder %s45, %s46
    %p55 = scmp.eq.s32.totalorder %s14, 0
    %p56 = por %p54, %p55
    %p57 = scmp.ne.s32.totalorder %s45, %s46
    %p58 = scmp.eq.s32.totalorder %s15, 1
    %p59 = por %p57, %p58
    %p61 = scmp.ne.s32.totalorder %s46, %s60
    %p62 = scmp.eq.s32.totalorder %s15, 0
    %p63 = por %p61, %p62
    %s65 = sadd.s32 %s64, 1
    %p68 = scmp.eq.s32.totalorder %s9, 1
    %p69 = scmp.ne.s32.totalorder %s64, %s66
    %p70 = scmp.eq.s32.totalorder %s9, 0
    %p71 = por %p69, %p70
    %p72 = scmp.ne.s32.totalorder %s64, %s66
    %p73 = scmp.eq.s32.totalorder %s14, 1
    %p74 = por %p72, %p73
    %p75 = scmp.ne.s32.totalorder %s66, %s67
    %p76 = scmp.eq.s32.totalorder %s14, 0
    %p77 = por %p75, %p76
    %p78 = scmp.ne.s32.totalorder %s66, %s67
    %p79 = scmp.eq.s32.totalorder %s15, 1
    %p80 = por %p78, %p79
    %p82 = scmp.ne.s32.totalorder %s67, %s81
    %p83 = scmp.eq.s32.totalorder %s15, 0
    %p84 = por %p82, %p83
    %s85 = ssub.s32 %s9, %s16
    %p86 = scmp.eq.s32.totalorder %s85, 0
    %s88 = sadd.s32 %s87, 1
    %s89 = scalar_select %p86, %s87, %s88
    %p92 = pneg %p86
    %p93 = scmp.eq.s32.totalorder %s9, 1
    %p94 = por %p92, %p93
    %p95 = scmp.ne.s32.totalorder %s87, %s90
    %p96 = scmp.eq.s32.totalorder %s9, 0
    %p97 = por %p95, %p96
    %p98 = scmp.ne.s32.totalorder %s87, %s90
    %p99 = scmp.eq.s32.totalorder %s14, 1
    %p100 = por %p98, %p99
    %p101 = scmp.ne.s32.totalorder %s90, %s91
    %p102 = scmp.eq.s32.totalorder %s14, 0
    %p103 = por %p101, %p102
    %p104 = scmp.ne.s32.totalorder %s90, %s91
    %p105 = scmp.eq.s32.totalorder %s15, 1
    %p106 = por %p104, %p105
    %p108 = scmp.ne.s32.totalorder %s91, %s107
    %p109 = scmp.eq.s32.totalorder %s15, 0
    %p110 = por %p108, %p109
    %p111 = scmp.le.s32.totalorder 1, %s9
    %p112 = scmp.lt.s32.totalorder %s9, 3
    %p113 = pnand %p111, %p112
    %p114 = pneg %p113
    // Predicated region
    $region9: #{sample_convnet_forward.7} parent=5 // pred_check
      _
    $region10: #{sample_convnet_forward.7} parent=5 // pred_check_branch
      %116 = sbr.rel (%p113) target = $region12
    $region11: #{sample_convnet_forward.7} parent=5 // pred_region
      %s117 = ssub.s32 %s9, 1
      // Predicated region
      $region13: #{sample_convnet_forward.7} parent=11 // pred_check
        %p118 = pneg %p56
      $region14: #{sample_convnet_forward.7} parent=11 // pred_check_branch
        %120 = sbr.rel (%p118) target = $region16
      $region15: #{sample_convnet_forward.7} parent=11 // pred_region
        _
      $region16: #{sample_convnet_forward.7} parent=11 // pred_fallthru
        _
      // Predicated region
      $region17: #{sample_convnet_forward.7} parent=11 // pred_check
        %p121 = pneg %p77
      $region18: #{sample_convnet_forward.7} parent=11 // pred_check_branch
        %123 = sbr.rel (%p121) target = $region20
      $region19: #{sample_convnet_forward.7} parent=11 // pred_region
        _
      $region20: #{sample_convnet_forward.7} parent=11 // pred_fallthru
        _
    $region12: #{sample_convnet_forward.7} parent=5 // pred_fallthru
      _
    %p124 = scmp.lt.s32.totalorder %s9, 2
    // Predicated region
    $region21: #{sample_convnet_forward.7} parent=5 // pred_check
      %p125 = pneg %p124
    $region22: #{sample_convnet_forward.7} parent=5 // pred_check_branch
      %127 = sbr.rel (%p125) target = $region24
    $region23: #{sample_convnet_forward.7} parent=5 // pred_region
      // Predicated region
      $region25: #{sample_convnet_forward.7} parent=23 // pred_check
        %p128 = pneg %p29
      $region26: #{sample_convnet_forward.7} parent=23 // pred_check_branch
        %130 = sbr.rel (%p128) target = $region28
      $region27: #{sample_convnet_forward.7} parent=23 // pred_region
        %s131 = smul.u32 4, %s9
        %p132 = scmp.lt.s32.totalorder %s131, 7
        %s133 = scalar_select %p132, %s131, 7
        %s134 = smul.addr %s133, 2
        %s135 = smul.addr %s134, 4
        %s136 = scalar_lea.vmem %s0, %s135
        %s137 = smul.u32 4, %s9
      $region28: #{sample_convnet_forward.7} parent=23 // pred_fallthru
        _
    $region24: #{sample_convnet_forward.7} parent=5 // pred_fallthru
      _
    %p138 = scmp.le.s32.totalorder 1, %s9
    %p139 = scmp.lt.s32.totalorder %s9, 3
    %p140 = pnand %p138, %p139
    %p141 = pneg %p140
    // Predicated region
    $region29: #{sample_convnet_forward.7} parent=5 // pred_check
      _
    $region30: #{sample_convnet_forward.7} parent=5 // pred_check_branch
      %143 = sbr.rel (%p140) target = $region32
    $region31: #{sample_convnet_forward.7} parent=5 // pred_region
      %s144 = ssub.s32 %s9, 1
      %s145 = smul.u32 4, %s14
      %p146 = scmp.lt.s32.totalorder %s145, 7
      %s147 = scalar_select %p146, %s145, 7
      %s148 = smul.addr %s147, 2
      %s149 = smul.addr %s148, 4
      %s150 = scalar_lea.vmem %s0, %s149
      %p151 = pneg %p35
      %p152 = pneg %p32
      %p153 = pneg %p56
      %p154 = pneg %p53
      %p155 = pneg %p77
      %p156 = pneg %p74
      %p157 = pneg %p103
      %p158 = pneg %p100
      %s159 = smul.u32 4, %s14
      %p160 = scmp.lt.s32.totalorder %s159, 7
      %s161 = scalar_select %p160, %s159, 7
      %s162 = smul.addr %s161, 8
      %s163 = scalar_lea.vmem %s3, %s162
      %s164 = smul.u32 4, %s14
      %p165 = scmp.lt.s32.totalorder %s164, 7
      %s166 = scalar_select %p165, %s164, 7
      %s167 = smul.addr %s166, 2
      %s168 = smul.addr %s167, 4
      %s169 = scalar_lea.vmem %s0, %s168
      %s170 = smul.u32 4, %s14
      %s171 = smul.u32 4, %s14
      %p172 = scmp.lt.s32.totalorder %s171, 7
      %s173 = scalar_select %p172, %s171, 7
      %s174 = smul.addr %s173, 8
      %s175 = scalar_lea.vmem %s3, %s174
      %s176 = smul.u32 4, %s14
      %v177 = vld [vmem:[%s169] sm:$0xff]
      %v178 = vld [vmem:[%s169 + $0x8] sm:$0xff]
      %v179 = vld [vmem:[%s169 + $0x10] sm:$0xff]
      %v180 = vld [vmem:[%s169 + $0x18] sm:$0xff]
      %v181 = vld [vmem:[%s1] sm:$0xf]
      %v182 = vld [vmem:[%s1 + $0x4] sm:$0xf]
      %v183 = vld [vmem:[%s1 + $0x8] sm:$0xf]
      %v184 = vld [vmem:[%s1 + $0xc] sm:$0xf]
      %v185 = vld [vmem:[%s1 + $0x10] sm:$0xf]
      %v186 = vld [vmem:[%s1 + $0x14] sm:$0xf]
      %v187 = vld [vmem:[%s1 + $0x18] sm:$0xf]
      %v188 = vld [vmem:[%s1 + $0x1c] sm:$0xf]
      %v189 = vld [vmem:[%s1 + $0x20] sm:$0xf]
      %v190 = vld [vmem:[%s1 + $0x24] sm:$0xf]
      %v191 = vld [vmem:[%s1 + $0x28] sm:$0xf]
      %v192 = vld [vmem:[%s1 + $0x2c] sm:$0xf]
      %v193 = vld [vmem:[%s1 + $0x30] sm:$0xf]
      %v194 = vld [vmem:[%s1 + $0x34] sm:$0xf]
      %v195 = vld [vmem:[%s1 + $0x38] sm:$0xf]
      %v196 = vld [vmem:[%s1 + $0x3c] sm:$0xf]
      %v197 = vld [vmem:[%s1 + $0x40] sm:$0xf]
      %v198 = vld [vmem:[%s1 + $0x44] sm:$0xf]
      %v199 = vld [vmem:[%s1 + $0x48] sm:$0xf]
      %v200 = vld [vmem:[%s1 + $0x4c] sm:$0xf]
      %v201 = vld [vmem:[%s1 + $0x50] sm:$0xf]
      %v202 = vld [vmem:[%s1 + $0x54] sm:$0xf]
      %v203 = vld [vmem:[%s1 + $0x58] sm:$0xf]
      %v204 = vld [vmem:[%s1 + $0x5c] sm:$0xf]
      %v205 = vld [vmem:[%s1 + $0x60] sm:$0xf]
      %v206 = vld [vmem:[%s1 + $0x64] sm:$0xf]
      %v207 = vld [vmem:[%s1 + $0x68] sm:$0xf]
      %v208 = vld [vmem:[%s1 + $0x6c] sm:$0xf]
      %v209 = vld [vmem:[%s1 + $0x70] sm:$0xf]
      %v210 = vld [vmem:[%s1 + $0x74] sm:$0xf]
      %v211 = vld [vmem:[%s1 + $0x78] sm:$0xf]
      %v212 = vld [vmem:[%s1 + $0x7c] sm:$0xf]
      %v213 = vld [vmem:[%s2] sm:$0x1]
      %v215 = vperm.slane %v213, 0
      %v221 = vunpack.c.l.b16 %v177
      %v222 = vunpack.c.h.b16 %v177
      %v223 = vunpack.c.l.b16 %v178
      %v224 = vunpack.c.h.b16 %v178
      %v225 = vunpack.c.l.b16 %v179
      %v226 = vunpack.c.h.b16 %v179
      %v227 = vunpack.c.l.b16 %v180
      %v228 = vunpack.c.h.b16 %v180
      %v229 = vpack.c.b16 %v223, %v221
      %v230 = vpack.c.b16 %v224, %v222
      %v231 = vpack.c.b16 %v227, %v225
      %v232 = vpack.c.b16 %v228, %v226
      %v269 = vunpack.c.l.b16 %v181
      %v270 = vunpack.c.l.b16 %v182
      %v271 = vunpack.c.l.b16 %v183
      %v272 = vunpack.c.l.b16 %v184
      %v273 = vunpack.c.l.b16 %v185
      %v274 = vunpack.c.l.b16 %v186
      %v275 = vunpack.c.l.b16 %v187
      %v276 = vunpack.c.l.b16 %v188
      %v277 = vunpack.c.l.b16 %v189
      %v278 = vunpack.c.l.b16 %v190
      %v279 = vunpack.c.l.b16 %v191
      %v280 = vunpack.c.l.b16 %v192
      %v281 = vunpack.c.l.b16 %v193
      %v282 = vunpack.c.l.b16 %v194
      %v283 = vunpack.c.l.b16 %v195
      %v284 = vunpack.c.l.b16 %v196
      %v285 = vunpack.c.l.b16 %v197
      %v286 = vunpack.c.l.b16 %v198
      %v287 = vunpack.c.l.b16 %v199
      %v288 = vunpack.c.l.b16 %v200
      %v289 = vunpack.c.l.b16 %v201
      %v290 = vunpack.c.l.b16 %v202
      %v291 = vunpack.c.l.b16 %v203
      %v292 = vunpack.c.l.b16 %v204
      %v293 = vunpack.c.l.b16 %v205
      %v294 = vunpack.c.l.b16 %v206
      %v295 = vunpack.c.l.b16 %v207
      %v296 = vunpack.c.l.b16 %v208
      %v297 = vunpack.c.l.b16 %v209
      %v298 = vunpack.c.l.b16 %v210
      %v299 = vunpack.c.l.b16 %v211
      %v300 = vunpack.c.l.b16 %v212
      %v301 = vpack.c.b16 %v270, %v269
      %v302 = vpack.c.b16 %v272, %v271
      %v303 = vpack.c.b16 %v274, %v273
      %v304 = vpack.c.b16 %v276, %v275
      %v305 = vpack.c.b16 %v278, %v277
      %v306 = vpack.c.b16 %v280, %v279
      %v307 = vpack.c.b16 %v282, %v281
      %v308 = vpack.c.b16 %v284, %v283
      %v309 = vpack.c.b16 %v286, %v285
      %v310 = vpack.c.b16 %v288, %v287
      %v311 = vpack.c.b16 %v290, %v289
      %v312 = vpack.c.b16 %v292, %v291
      %v313 = vpack.c.b16 %v294, %v293
      %v314 = vpack.c.b16 %v296, %v295
      %v315 = vpack.c.b16 %v298, %v297
      %v316 = vpack.c.b16 %v300, %v299
      %333 = vmatpush.bf16.msra.mxu0 %v308
      %334 = vmatpush.bf16.msra.mxu0 %v307
      %335 = vmatpush.bf16.msra.mxu0 %v306
      %336 = vmatpush.bf16.msra.mxu0 %v305
      %337 = vmatpush.bf16.msra.mxu0 %v304
      %338 = vmatpush.bf16.msra.mxu0 %v303
      %339 = vmatpush.bf16.msra.mxu0 %v302
      %340 = vmatpush.bf16.msra.mxu0 %v301
      %341 = vmatmul.bf16.gmra.mxu0 %v229
      %v342 = vpop.f32.mrf.mxu0
      %v343 = vadd.f32 %v215, %v342
      %v344 = vpop.f32.mrf.mxu0
      %v345 = vadd.f32 %v215, %v344
      %346 = vmatmul.bf16.gmra.mxu0 %v231
      %v347 = vpop.f32.mrf.mxu0
      %v348 = vadd.f32 %v215, %v347
      %v349 = vpop.f32.mrf.mxu0
      %v350 = vadd.f32 %v215, %v349
      %351 = vdwg.mxu0
      %352 = vmatpush.bf16.msra.mxu0 %v316
      %353 = vmatpush.bf16.msra.mxu0 %v315
      %354 = vmatpush.bf16.msra.mxu0 %v314
      %355 = vmatpush.bf16.msra.mxu0 %v313
      %356 = vmatpush.bf16.msra.mxu0 %v312
      %357 = vmatpush.bf16.msra.mxu0 %v311
      %358 = vmatpush.bf16.msra.mxu0 %v310
      %359 = vmatpush.bf16.msra.mxu0 %v309
      %360 = vmatmul.bf16.gmra.mxu0 %v230
      %v361 = vpop.f32.mrf.mxu0
      %v362 = vadd.f32 %v343, %v361
      %v363 = vpop.f32.mrf.mxu0
      %v364 = vadd.f32 %v345, %v363
      %365 = vmatmul.bf16.gmra.mxu0 %v232
      %v366 = vpop.f32.mrf.mxu0
      %v367 = vadd.f32 %v348, %v366
      %v368 = vpop.f32.mrf.mxu0
      %v369 = vadd.f32 %v350, %v368
      %370 = vdwg.mxu0
      %v371 = vmax.f32 %v362, 0.0
      %v372 = vmax.f32 %v364, 0.0
      %v373 = vmax.f32 %v367, 0.0
      %v374 = vmax.f32 %v369, 0.0
      %vm375 = vcmask 261120
      %376 = vst.msk [vmem:[%s175] sm:$0xff] %vm375, %v371
      %377 = vst.msk [vmem:[%s175 + $0x8] sm:$0xff] %vm375, %v372
      %378 = vst.msk [vmem:[%s175 + $0x10] sm:$0xff] %vm375, %v373
      %379 = vst.msk [vmem:[%s175 + $0x18] sm:$0xff] %vm375, %v374
      %s380 = smul.u32 4, %s14
      %p381 = scmp.lt.s32.totalorder %s380, 7
      %s382 = scalar_select %p381, %s380, 7
      %s383 = smul.addr %s382, 8
      %s384 = scalar_lea.vmem %s3, %s383
      // Predicated region
      $region33: #{sample_convnet_forward.7} parent=31 // pred_check
        %p385 = pneg %p100
      $region34: #{sample_convnet_forward.7} parent=31 // pred_check_branch
        %387 = sbr.rel (%p385) target = $region36
      $region35: #{sample_convnet_forward.7} parent=31 // pred_region
        %s388 = smul.u32 4, %s14
      $region36: #{sample_convnet_forward.7} parent=31 // pred_fallthru
        _
    $region32: #{sample_convnet_forward.7} parent=5 // pred_fallthru
      _
    %p389 = scmp.le.s32.totalorder 2, %s9
    // Predicated region
    $region37: #{sample_convnet_forward.7} parent=5 // pred_check
      %p390 = pneg %p389
    $region38: #{sample_convnet_forward.7} parent=5 // pred_check_branch
      %392 = sbr.rel (%p390) target = $region40
    $region39: #{sample_convnet_forward.7} parent=5 // pred_region
      %s393 = ssub.s32 %s9, 2
      // Predicated region
      $region41: #{sample_convnet_forward.7} parent=39 // pred_check
        %p394 = pneg %p106
      $region42: #{sample_convnet_forward.7} parent=39 // pred_check_branch
        %396 = sbr.rel (%p394) target = $region44
      $region43: #{sample_convnet_forward.7} parent=39 // pred_region
        %s397 = smul.u32 4, %s15
        %p398 = scmp.lt.s32.totalorder %s397, 7
        %s399 = scalar_select %p398, %s397, 7
        %s400 = smul.addr %s399, 8
        %s401 = scalar_lea.vmem %s3, %s400
      $region44: #{sample_convnet_forward.7} parent=39 // pred_fallthru
        _
    $region40: #{sample_convnet_forward.7} parent=5 // pred_fallthru
      _
  $region6: #{sample_convnet_forward.7} parent=0 // loop_footer
    %s13 = sadd.s32 1, %s9
  $region7: #{sample_convnet_forward.7} parent=0 // loop_footer_branch
    %8 = sbr.rel target = $region3
  $region8: #{sample_convnet_forward.7} parent=0 // loop_exit
    _

// kernel: sample_convnet_forward.8
$region0: #{sample_convnet_forward.8}
  #allocation0 [shape = 'u32[]', space=smem, size = 0x4, offset = 0x4, fixed_abs, tag = 'smem constant byte address 0x4 - core index']
  #allocation1 [shape = 'u32[72,128]{1,0:T(1,128)}', space=vmem, size = 0x9000, scoped, tag = 'internal scratch']
  %s0 = inlined_call_operand.vmem [shape: f32[2,5,5,32], index: 0, kind: input, shape index: {}]
  %s1 = inlined_call_operand.vmem [shape: f32[2,4,4,32], index: 1, kind: output, shape index: {}]
  %s2 = sld [smem:[#allocation0]]
  $region37: #{sample_convnet_forward.8} parent=0
    _
  %s4 = ssub.s32 1, %s2
  %s5 = scalar_select 0, %s4, %s2
  loop: start=0, step=1, limit=4
  $region2: #{sample_convnet_forward.8} parent=0 // loop_pre_header
    _
  $region3: #{sample_convnet_forward.8} parent=0 // loop_header
    %s7 = sphi 0, %s11
    %p8 = scmp.ge.s32.totalorder %s7, 4
    %s17 = sphi 0, %s19
    %s20 = sphi 0, %s17
    %s21 = sphi 0, %s20
    %s37 = sphi 0, %s21
    %s43 = sphi 0, %s45
    %s46 = sphi 0, %s43
    %s47 = sphi 0, %s46
    %s63 = sphi 0, %s47
  $region4: #{sample_convnet_forward.8} parent=0 // loop_header_branch
    %10 = sbr.rel (%p8) target = $region8
  $region5: #{sample_convnet_forward.8} parent=0 // loop_body
    %s12 = ssub.s32 %s7, 1
    %s13 = ssub.s32 %s7, 2
    %s14 = sadd.s32 %s7, 1
    %s15 = ssub.s32 %s7, %s14
    %p16 = scmp.eq.s32.totalorder %s15, 0
    %s18 = sadd.s32 %s17, 1
    %s19 = scalar_select %p16, %s17, %s18
    %p22 = pneg %p16
    %p23 = scmp.eq.s32.totalorder %s7, 1
    %p24 = por %p22, %p23
    %p25 = scmp.ne.s32.totalorder %s17, %s20
    %p26 = scmp.eq.s32.totalorder %s7, 0
    %p27 = por %p25, %p26
    %p28 = scmp.ne.s32.totalorder %s17, %s20
    %p29 = scmp.eq.s32.totalorder %s12, 1
    %p30 = por %p28, %p29
    %p31 = scmp.ne.s32.totalorder %s20, %s21
    %p32 = scmp.eq.s32.totalorder %s12, 0
    %p33 = por %p31, %p32
    %p34 = scmp.ne.s32.totalorder %s20, %s21
    %p35 = scmp.eq.s32.totalorder %s13, 1
    %p36 = por %p34, %p35
    %p38 = scmp.ne.s32.totalorder %s21, %s37
    %p39 = scmp.eq.s32.totalorder %s13, 0
    %p40 = por %p38, %p39
    %s41 = ssub.s32 %s7, %s14
    %p42 = scmp.eq.s32.totalorder %s41, 0
    %s44 = sadd.s32 %s43, 1
    %s45 = scalar_select %p42, %s43, %s44
    %p48 = pneg %p42
    %p49 = scmp.eq.s32.totalorder %s7, 1
    %p50 = por %p48, %p49
    %p51 = scmp.ne.s32.totalorder %s43, %s46
    %p52 = scmp.eq.s32.totalorder %s7, 0
    %p53 = por %p51, %p52
    %p54 = scmp.ne.s32.totalorder %s43, %s46
    %p55 = scmp.eq.s32.totalorder %s12, 1
    %p56 = por %p54, %p55
    %p57 = scmp.ne.s32.totalorder %s46, %s47
    %p58 = scmp.eq.s32.totalorder %s12, 0
    %p59 = por %p57, %p58
    %p60 = scmp.ne.s32.totalorder %s46, %s47
    %p61 = scmp.eq.s32.totalorder %s13, 1
    %p62 = por %p60, %p61
    %p64 = scmp.ne.s32.totalorder %s47, %s63
    %p65 = scmp.eq.s32.totalorder %s13, 0
    %p66 = por %p64, %p65
    %p67 = scmp.le.s32.totalorder 1, %s7
    %p68 = scmp.lt.s32.totalorder %s7, 3
    %p69 = pnand %p67, %p68
    %p70 = pneg %p69
    // Predicated region
    $region9: #{sample_convnet_forward.8} parent=5 // pred_check
      _
    $region10: #{sample_convnet_forward.8} parent=5 // pred_check_branch
      %72 = sbr.rel (%p69) target = $region12
    $region11: #{sample_convnet_forward.8} parent=5 // pred_region
      %s73 = ssub.s32 %s7, 1
    $region12: #{sample_convnet_forward.8} parent=5 // pred_fallthru
      _
    %p74 = scmp.lt.s32.totalorder %s7, 2
    // Predicated region
    $region13: #{sample_convnet_forward.8} parent=5 // pred_check
      %p75 = pneg %p74
    $region14: #{sample_convnet_forward.8} parent=5 // pred_check_branch
      %77 = sbr.rel (%p75) target = $region16
    $region15: #{sample_convnet_forward.8} parent=5 // pred_region
      // Predicated region
      $region17: #{sample_convnet_forward.8} parent=15 // pred_check
        %p78 = pneg %p27
      $region18: #{sample_convnet_forward.8} parent=15 // pred_check_branch
        %80 = sbr.rel (%p78) target = $region20
      $region19: #{sample_convnet_forward.8} parent=15 // pred_region
        %p81 = scmp.lt.s32.totalorder %s7, 1
        %s82 = scalar_select %p81, %s7, 1
        %s83 = smul.addr %s82, 5
        %s84 = smul.addr %s83, 8
        %s85 = scalar_lea.vmem %s0, %s84
      $region20: #{sample_convnet_forward.8} parent=15 // pred_fallthru
        _
    $region16: #{sample_convnet_forward.8} parent=5 // pred_fallthru
      _
    %p86 = scmp.le.s32.totalorder 1, %s7
    %p87 = scmp.lt.s32.totalorder %s7, 3
    %p88 = pnand %p86, %p87
    %p89 = pneg %p88
    // Predicated region
    $region21: #{sample_convnet_forward.8} parent=5 // pred_check
      _
    $region22: #{sample_convnet_forward.8} parent=5 // pred_check_branch
      %91 = sbr.rel (%p88) target = $region24
    $region23: #{sample_convnet_forward.8} parent=5 // pred_region
      %s92 = ssub.s32 %s7, 1
      %p93 = scmp.lt.s32.totalorder %s12, 1
      %s94 = scalar_select %p93, %s12, 1
      %s95 = smul.addr %s94, 5
      %s96 = smul.addr %s95, 8
      %s97 = scalar_lea.vmem %s0, %s96
      %p98 = pneg %p33
      %p99 = pneg %p30
      %p100 = pneg %p59
      %p101 = pneg %p56
      %p102 = scmp.lt.s32.totalorder %s12, 1
      %s103 = scalar_select %p102, %s12, 1
      %s104 = smul.addr %s103, 4
      %s105 = smul.addr %s104, 4
      %s106 = scalar_lea.vmem %s1, %s105
      %p107 = scmp.lt.s32.totalorder %s12, 1
      %s108 = scalar_select %p107, %s12, 1
      %s109 = smul.addr %s108, 5
      %s110 = smul.addr %s109, 8
      %s111 = scalar_lea.vmem %s0, %s110
      %p112 = scmp.lt.s32.totalorder %s12, 1
      %s113 = scalar_select %p112, %s12, 1
      %s114 = smul.addr %s113, 4
      %s115 = smul.addr %s114, 4
      %s116 = scalar_lea.vmem %s1, %s115
      %v117 = vld [vmem:[%s111] sm:$0x1f]
      %v118 = vld [vmem:[%s111 + $0x8] sm:$0x1f]
      %v119 = vld [vmem:[%s111 + $0x10] sm:$0x1f]
      %v120 = vld [vmem:[%s111 + $0x18] sm:$0x1f]
      %v121 = vld [vmem:[%s111 + $0x20] sm:$0x1f]
      %v122 = vmax.f32 %v117, %v118
      %v123 = vmax.f32 %v118, %v119
      %v124 = vmax.f32 %v119, %v120
      %v125 = vmax.f32 %v120, %v121
      %v130 = vrot.slane %v122, 1
      %v131 = vrot.slane %v123, 1
      %v132 = vrot.slane %v124, 1
      %v133 = vrot.slane %v125, 1
      %v138 = vmax.f32 %v122, %v130
      %v139 = vmax.f32 %v123, %v131
      %v140 = vmax.f32 %v124, %v132
      %v141 = vmax.f32 %v125, %v133
      %vm142 = vcmask 257024
      %143 = vst.msk [vmem:[%s116] sm:$0xf] %vm142, %v138
      %144 = vst.msk [vmem:[%s116 + $0x4] sm:$0xf] %vm142, %v139
      %145 = vst.msk [vmem:[%s116 + $0x8] sm:$0xf] %vm142, %v140
      %146 = vst.msk [vmem:[%s116 + $0xc] sm:$0xf] %vm142, %v141
      %p147 = scmp.lt.s32.totalorder %s12, 1
      %s148 = scalar_select %p147, %s12, 1
      %s149 = smul.addr %s148, 4
      %s150 = smul.addr %s149, 4
      %s151 = scalar_lea.vmem %s1, %s150
      // Predicated region
      $region25: #{sample_convnet_forward.8} parent=23 // pred_check
        %p152 = pneg %p56
      $region26: #{sample_convnet_forward.8} parent=23 // pred_check_branch
        %154 = sbr.rel (%p152) target = $region28
      $region27: #{sample_convnet_forward.8} parent=23 // pred_region
        _
      $region28: #{sample_convnet_forward.8} parent=23 // pred_fallthru
        _
    $region24: #{sample_convnet_forward.8} parent=5 // pred_fallthru
      _
    %p155 = scmp.le.s32.totalorder 2, %s7
    // Predicated region
    $region29: #{sample_convnet_forward.8} parent=5 // pred_check
      %p156 = pneg %p155
    $region30: #{sample_convnet_forward.8} parent=5 // pred_check_branch
      %158 = sbr.rel (%p156) target = $region32
    $region31: #{sample_convnet_forward.8} parent=5 // pred_region
      %s159 = ssub.s32 %s7, 2
      // Predicated region
      $region33: #{sample_convnet_forward.8} parent=31 // pred_check
        %p160 = pneg %p62
      $region34: #{sample_convnet_forward.8} parent=31 // pred_check_branch
        %162 = sbr.rel (%p160) target = $region36
      $region35: #{sample_convnet_forward.8} parent=31 // pred_region
        %p163 = scmp.lt.s32.totalorder %s13, 1
        %s164 = scalar_select %p163, %s13, 1
        %s165 = smul.addr %s164, 4
        %s166 = smul.addr %s165, 4
        %s167 = scalar_lea.vmem %s1, %s166
      $region36: #{sample_convnet_forward.8} parent=31 // pred_fallthru
        _
    $region32: #{sample_convnet_forward.8} parent=5 // pred_fallthru
      _
  $region6: #{sample_convnet_forward.8} parent=0 // loop_footer
    %s11 = sadd.s32 1, %s7
  $region7: #{sample_convnet_forward.8} parent=0 // loop_footer_branch
    %6 = sbr.rel target = $region3
  $region8: #{sample_convnet_forward.8} parent=0 // loop_exit
    _

// kernel: sample_convnet_forward.9
$region0: #{sample_convnet_forward.9}
  #allocation0 [shape = 'u32[]', space=smem, size = 0x4, offset = 0x4, fixed_abs, tag = 'smem constant byte address 0x4 - core index']
  #allocation1 [shape = 'u32[72,128]{1,0:T(1,128)}', space=vmem, size = 0x9000, scoped, tag = 'internal scratch']
  %s0 = inlined_call_operand.vmem [shape: bf16[8,512], index: 0, kind: input, shape index: {}]
  %s1 = inlined_call_operand.vmem [shape: bf16[512,32], index: 1, kind: input, shape index: {}]
  %s2 = inlined_call_operand.vmem [shape: f32[1,32], index: 2, kind: input, shape index: {}]
  %s3 = inlined_call_operand.vmem [shape: bf16[32,10], index: 3, kind: input, shape index: {}]
  %s4 = inlined_call_operand.vmem [shape: f32[1,10], index: 4, kind: input, shape index: {}]
  %s5 = inlined_call_operand.vmem [shape: f32[8,10], index: 5, kind: output, shape index: {}]
  %s6 = sld [smem:[#allocation0]]
  $region30: #{sample_convnet_forward.9} parent=0
    _
  %s8 = ssub.s32 1, %s6
  %s9 = scalar_select 0, %s8, %s6
  // Predicated region
  $region2: #{sample_convnet_forward.9} parent=0 // pred_check
    _
  $region3: #{sample_convnet_forward.9} parent=0 // pred_check_branch
    %11 = sbr.rel (0) target = $region5
  $region4: #{sample_convnet_forward.9} parent=0 // pred_region
    _
  $region5: #{sample_convnet_forward.9} parent=0 // pred_fallthru
    _
  // Predicated region
  $region6: #{sample_convnet_forward.9} parent=0 // pred_check
    _
  $region7: #{sample_convnet_forward.9} parent=0 // pred_check_branch
    %13 = sbr.rel (0) target = $region9
  $region8: #{sample_convnet_forward.9} parent=0 // pred_region
    _
  $region9: #{sample_convnet_forward.9} parent=0 // pred_fallthru
    _
  // Predicated region
  $region10: #{sample_convnet_forward.9} parent=0 // pred_check
    _
  $region11: #{sample_convnet_forward.9} parent=0 // pred_check_branch
    %15 = sbr.rel (0) target = $region13
  $region12: #{sample_convnet_forward.9} parent=0 // pred_region
    _
  $region13: #{sample_convnet_forward.9} parent=0 // pred_fallthru
    _
  // Predicated region
  $region14: #{sample_convnet_forward.9} parent=0 // pred_check
    _
  $region15: #{sample_convnet_forward.9} parent=0 // pred_check_branch
    %17 = sbr.rel (0) target = $region17
  $region16: #{sample_convnet_forward.9} parent=0 // pred_region
    _
  $region17: #{sample_convnet_forward.9} parent=0 // pred_fallthru
    _
  // Predicated region
  $region18: #{sample_convnet_forward.9} parent=0 // pred_check
    _
  $region19: #{sample_convnet_forward.9} parent=0 // pred_check_branch
    %19 = sbr.rel (0) target = $region21
  $region20: #{sample_convnet_forward.9} parent=0 // pred_region
    _
  $region21: #{sample_convnet_forward.9} parent=0 // pred_fallthru
    _
  %v21 = vld [vmem:[%s0] sm:$0xff]
  %v22 = vld [vmem:[%s0 + $0x8] sm:$0xff]
  %v23 = vld [vmem:[%s1] sm:$0xf]
  %v24 = vld [vmem:[%s1 + $0x4] sm:$0xf]
  %v25 = vld [vmem:[%s1 + $0x8] sm:$0xf]
  %v26 = vld [vmem:[%s1 + $0xc] sm:$0xf]
  %v27 = vld [vmem:[%s1 + $0x10] sm:$0xf]
  %v28 = vld [vmem:[%s1 + $0x14] sm:$0xf]
  %v29 = vld [vmem:[%s1 + $0x18] sm:$0xf]
  %v30 = vld [vmem:[%s1 + $0x1c] sm:$0xf]
  %v31 = vld [vmem:[%s1 + $0x20] sm:$0xf]
  %v32 = vld [vmem:[%s1 + $0x24] sm:$0xf]
  %v33 = vld [vmem:[%s1 + $0x28] sm:$0xf]
  %v34 = vld [vmem:[%s1 + $0x2c] sm:$0xf]
  %v35 = vld [vmem:[%s1 + $0x30] sm:$0xf]
  %v36 = vld [vmem:[%s1 + $0x34] sm:$0xf]
  %v37 = vld [vmem:[%s1 + $0x38] sm:$0xf]
  %v38 = vld [vmem:[%s1 + $0x3c] sm:$0xf]
  %v39 = vld [vmem:[%s1 + $0x40] sm:$0xf]
  %v40 = vld [vmem:[%s1 + $0x44] sm:$0xf]
  %v41 = vld [vmem:[%s1 + $0x48] sm:$0xf]
  %v42 = vld [vmem:[%s1 + $0x4c] sm:$0xf]
  %v43 = vld [vmem:[%s1 + $0x50] sm:$0xf]
  %v44 = vld [vmem:[%s1 + $0x54] sm:$0xf]
  %v45 = vld [vmem:[%s1 + $0x58] sm:$0xf]
  %v46 = vld [vmem:[%s1 + $0x5c] sm:$0xf]
  %v47 = vld [vmem:[%s1 + $0x60] sm:$0xf]
  %v48 = vld [vmem:[%s1 + $0x64] sm:$0xf]
  %v49 = vld [vmem:[%s1 + $0x68] sm:$0xf]
  %v50 = vld [vmem:[%s1 + $0x6c] sm:$0xf]
  %v51 = vld [vmem:[%s1 + $0x70] sm:$0xf]
  %v52 = vld [vmem:[%s1 + $0x74] sm:$0xf]
  %v53 = vld [vmem:[%s1 + $0x78] sm:$0xf]
  %v54 = vld [vmem:[%s1 + $0x7c] sm:$0xf]
  %v55 = vld [vmem:[%s1 + $0x80] sm:$0xf]
  %v56 = vld [vmem:[%s1 + $0x84] sm:$0xf]
  %v57 = vld [vmem:[%s1 + $0x88] sm:$0xf]
  %v58 = vld [vmem:[%s1 + $0x8c] sm:$0xf]
  %v59 = vld [vmem:[%s1 + $0x90] sm:$0xf]
  %v60 = vld [vmem:[%s1 + $0x94] sm:$0xf]
  %v61 = vld [vmem:[%s1 + $0x98] sm:$0xf]
  %v62 = vld [vmem:[%s1 + $0x9c] sm:$0xf]
  %v63 = vld [vmem:[%s1 + $0xa0] sm:$0xf]
  %v64 = vld [vmem:[%s1 + $0xa4] sm:$0xf]
  %v65 = vld [vmem:[%s1 + $0xa8] sm:$0xf]
  %v66 = vld [vmem:[%s1 + $0xac] sm:$0xf]
  %v67 = vld [vmem:[%s1 + $0xb0] sm:$0xf]
  %v68 = vld [vmem:[%s1 + $0xb4] sm:$0xf]
  %v69 = vld [vmem:[%s1 + $0xb8] sm:$0xf]
  %v70 = vld [vmem:[%s1 + $0xbc] sm:$0xf]
  %v71 = vld [vmem:[%s1 + $0xc0] sm:$0xf]
  %v72 = vld [vmem:[%s1 + $0xc4] sm:$0xf]
  %v73 = vld [vmem:[%s1 + $0xc8] sm:$0xf]
  %v74 = vld [vmem:[%s1 + $0xcc] sm:$0xf]
  %v75 = vld [vmem:[%s1 + $0xd0] sm:$0xf]
  %v76 = vld [vmem:[%s1 + $0xd4] sm:$0xf]
  %v77 = vld [vmem:[%s1 + $0xd8] sm:$0xf]
  %v78 = vld [vmem:[%s1 + $0xdc] sm:$0xf]
  %v79 = vld [vmem:[%s1 + $0xe0] sm:$0xf]
  %v80 = vld [vmem:[%s1 + $0xe4] sm:$0xf]
  %v81 = vld [vmem:[%s1 + $0xe8] sm:$0xf]
  %v82 = vld [vmem:[%s1 + $0xec] sm:$0xf]
  %v83 = vld [vmem:[%s1 + $0xf0] sm:$0xf]
  %v84 = vld [vmem:[%s1 + $0xf4] sm:$0xf]
  %v85 = vld [vmem:[%s1 + $0xf8] sm:$0xf]
  %v86 = vld [vmem:[%s1 + $0xfc] sm:$0xf]
  %v87 = vld [vmem:[%s2] sm:$0x1]
  %v89 = vperm.slane %v87, 0
  %v93 = vunpack.c.l.b16 %v21
  %v94 = vunpack.c.h.b16 %v21
  %v95 = vunpack.c.l.b16 %v22
  %v96 = vunpack.c.h.b16 %v22
  %v97 = vpack.c.b16 %v93, %v93
  %v98 = vpack.c.b16 %v94, %v94
  %v99 = vpack.c.b16 %v95, %v95
  %v100 = vpack.c.b16 %v96, %v96
  %v169 = vunpack.c.l.b16 %v23
  %v170 = vunpack.c.l.b16 %v24
  %v171 = vunpack.c.l.b16 %v25
  %v172 = vunpack.c.l.b16 %v26
  %v173 = vunpack.c.l.b16 %v27
  %v174 = vunpack.c.l.b16 %v28
  %v175 = vunpack.c.l.b16 %v29
  %v176 = vunpack.c.l.b16 %v30
  %v177 = vunpack.c.l.b16 %v31
  %v178 = vunpack.c.l.b16 %v32
  %v179 = vunpack.c.l.b16 %v33
  %v180 = vunpack.c.l.b16 %v34
  %v181 = vunpack.c.l.b16 %v35
  %v182 = vunpack.c.l.b16 %v36
  %v183 = vunpack.c.l.b16 %v37
  %v184 = vunpack.c.l.b16 %v38
  %v185 = vunpack.c.l.b16 %v39
  %v186 = vunpack.c.l.b16 %v40
  %v187 = vunpack.c.l.b16 %v41
  %v188 = vunpack.c.l.b16 %v42
  %v189 = vunpack.c.l.b16 %v43
  %v190 = vunpack.c.l.b16 %v44
  %v191 = vunpack.c.l.b16 %v45
  %v192 = vunpack.c.l.b16 %v46
  %v193 = vunpack.c.l.b16 %v47
  %v194 = vunpack.c.l.b16 %v48
  %v195 = vunpack.c.l.b16 %v49
  %v196 = vunpack.c.l.b16 %v50
  %v197 = vunpack.c.l.b16 %v51
  %v198 = vunpack.c.l.b16 %v52
  %v199 = vunpack.c.l.b16 %v53
  %v200 = vunpack.c.l.b16 %v54
  %v201 = vunpack.c.l.b16 %v55
  %v202 = vunpack.c.l.b16 %v56
  %v203 = vunpack.c.l.b16 %v57
  %v204 = vunpack.c.l.b16 %v58
  %v205 = vunpack.c.l.b16 %v59
  %v206 = vunpack.c.l.b16 %v60
  %v207 = vunpack.c.l.b16 %v61
  %v208 = vunpack.c.l.b16 %v62
  %v209 = vunpack.c.l.b16 %v63
  %v210 = vunpack.c.l.b16 %v64
  %v211 = vunpack.c.l.b16 %v65
  %v212 = vunpack.c.l.b16 %v66
  %v213 = vunpack.c.l.b16 %v67
  %v214 = vunpack.c.l.b16 %v68
  %v215 = vunpack.c.l.b16 %v69
  %v216 = vunpack.c.l.b16 %v70
  %v217 = vunpack.c.l.b16 %v71
  %v218 = vunpack.c.l.b16 %v72
  %v219 = vunpack.c.l.b16 %v73
  %v220 = vunpack.c.l.b16 %v74
  %v221 = vunpack.c.l.b16 %v75
  %v222 = vunpack.c.l.b16 %v76
  %v223 = vunpack.c.l.b16 %v77
  %v224 = vunpack.c.l.b16 %v78
  %v225 = vunpack.c.l.b16 %v79
  %v226 = vunpack.c.l.b16 %v80
  %v227 = vunpack.c.l.b16 %v81
  %v228 = vunpack.c.l.b16 %v82
  %v229 = vunpack.c.l.b16 %v83
  %v230 = vunpack.c.l.b16 %v84
  %v231 = vunpack.c.l.b16 %v85
  %v232 = vunpack.c.l.b16 %v86
  %v233 = vpack.c.b16 %v170, %v169
  %v234 = vpack.c.b16 %v172, %v171
  %v235 = vpack.c.b16 %v174, %v173
  %v236 = vpack.c.b16 %v176, %v175
  %v237 = vpack.c.b16 %v178, %v177
  %v238 = vpack.c.b16 %v180, %v179
  %v239 = vpack.c.b16 %v182, %v181
  %v240 = vpack.c.b16 %v184, %v183
  %v241 = vpack.c.b16 %v186, %v185
  %v242 = vpack.c.b16 %v188, %v187
  %v243 = vpack.c.b16 %v190, %v189
  %v244 = vpack.c.b16 %v192, %v191
  %v245 = vpack.c.b16 %v194, %v193
  %v246 = vpack.c.b16 %v196, %v195
  %v247 = vpack.c.b16 %v198, %v197
  %v248 = vpack.c.b16 %v200, %v199
  %v249 = vpack.c.b16 %v202, %v201
  %v250 = vpack.c.b16 %v204, %v203
  %v251 = vpack.c.b16 %v206, %v205
  %v252 = vpack.c.b16 %v208, %v207
  %v253 = vpack.c.b16 %v210, %v209
  %v254 = vpack.c.b16 %v212, %v211
  %v255 = vpack.c.b16 %v214, %v213
  %v256 = vpack.c.b16 %v216, %v215
  %v257 = vpack.c.b16 %v218, %v217
  %v258 = vpack.c.b16 %v220, %v219
  %v259 = vpack.c.b16 %v222, %v221
  %v260 = vpack.c.b16 %v224, %v223
  %v261 = vpack.c.b16 %v226, %v225
  %v262 = vpack.c.b16 %v228, %v227
  %v263 = vpack.c.b16 %v230, %v229
  %v264 = vpack.c.b16 %v232, %v231
  %297 = vmatpush.bf16.msra.mxu0 %v240
  %298 = vmatpush.bf16.msra.mxu0 %v239
  %299 = vmatpush.bf16.msra.mxu0 %v238
  %300 = vmatpush.bf16.msra.mxu0 %v237
  %301 = vmatpush.bf16.msra.mxu0 %v236
  %302 = vmatpush.bf16.msra.mxu0 %v235
  %303 = vmatpush.bf16.msra.mxu0 %v234
  %304 = vmatpush.bf16.msra.mxu0 %v233
  %305 = vmatmul.bf16.gmra.mxu0 %v97
  %v306 = vpop.f32.mrf.mxu0
  %v307 = vadd.f32 %v89, %v306
  %v308 = vpop.f32.mrf.mxu0
  %309 = vdwg.mxu0
  %310 = vmatpush.bf16.msra.mxu0 %v248
  %311 = vmatpush.bf16.msra.mxu0 %v247
  %312 = vmatpush.bf16.msra.mxu0 %v246
  %313 = vmatpush.bf16.msra.mxu0 %v245
  %314 = vmatpush.bf16.msra.mxu0 %v244
  %315 = vmatpush.bf16.msra.mxu0 %v243
  %316 = vmatpush.bf16.msra.mxu0 %v242
  %317 = vmatpush.bf16.msra.mxu0 %v241
  %318 = vmatmul.bf16.gmra.mxu0 %v98
  %v319 = vpop.f32.mrf.mxu0
  %v320 = vadd.f32 %v307, %v319
  %v321 = vpop.f32.mrf.mxu0
  %322 = vdwg.mxu0
  %323 = vmatpush.bf16.msra.mxu0 %v256
  %324 = vmatpush.bf16.msra.mxu0 %v255
  %325 = vmatpush.bf16.msra.mxu0 %v254
  %326 = vmatpush.bf16.msra.mxu0 %v253
  %327 = vmatpush.bf16.msra.mxu0 %v252
  %328 = vmatpush.bf16.msra.mxu0 %v251
  %329 = vmatpush.bf16.msra.mxu0 %v250
  %330 = vmatpush.bf16.msra.mxu0 %v249
  %331 = vmatmul.bf16.gmra.mxu0 %v99
  %v332 = vpop.f32.mrf.mxu0
  %v333 = vadd.f32 %v320, %v332
  %v334 = vpop.f32.mrf.mxu0
  %335 = vdwg.mxu0
  %336 = vmatpush.bf16.msra.mxu0 %v264
  %337 = vmatpush.bf16.msra.mxu0 %v263
  %338 = vmatpush.bf16.msra.mxu0 %v262
  %339 = vmatpush.bf16.msra.mxu0 %v261
  %340 = vmatpush.bf16.msra.mxu0 %v260
  %341 = vmatpush.bf16.msra.mxu0 %v259
  %342 = vmatpush.bf16.msra.mxu0 %v258
  %343 = vmatpush.bf16.msra.mxu0 %v257
  %344 = vmatmul.bf16.gmra.mxu0 %v100
  %v345 = vpop.f32.mrf.mxu0
  %v346 = vadd.f32 %v333, %v345
  %v347 = vpop.f32.mrf.mxu0
  %348 = vdwg.mxu0
  %v349 = vmax.f32 %v346, 0.0
  %v350 = vpack.c.bf16 %v349, %v349
  %v351 = vld [vmem:[%s3] sm:$0xf]
  %v352 = vld [vmem:[%s3 + $0x4] sm:$0xf]
  %v353 = vld [vmem:[%s3 + $0x8] sm:$0xf]
  %v354 = vld [vmem:[%s3 + $0xc] sm:$0xf]
  %v355 = vld [vmem:[%s4] sm:$0x1]
  %v357 = vperm.slane %v355, 0
  %v363 = vunpack.c.l.b16 %v351
  %v364 = vunpack.c.l.b16 %v352
  %v365 = vunpack.c.l.b16 %v353
  %v366 = vunpack.c.l.b16 %v354
  %v367 = vpack.c.b16 %v364, %v363
  %v368 = vpack.c.b16 %v366, %v365
  %vm371 = vcmask 261120
  %v373 = vsel %vm371, %v350, 0
  %375 = vmatpush.bf16.msra.mxu0 0
  %376 = vmatpush.bf16.msra.mxu0 0
  %377 = vmatpush.bf16.msra.mxu0 0
  %378 = vmatpush.bf16.msra.mxu0 0
  %379 = vmatpush.bf16.msra.mxu0 0
  %380 = vmatpush.bf16.msra.mxu0 0
  %381 = vmatpush.bf16.msra.mxu0 %v368
  %382 = vmatpush.bf16.msra.mxu0 %v367
  %383 = vmatmul.bf16.gmra.mxu0 %v373
  %v384 = vpop.f32.mrf.mxu0
  %v385 = vadd.f32 %v357, %v384
  %v386 = vpop.f32.mrf.mxu0
  %387 = vdwg.mxu0
  %vm388 = vcmask 80896
  %389 = vst.msk [vmem:[%s5] sm:$0xff] %vm388, %v385
  // Predicated region
  $region22: #{sample_convnet_forward.9} parent=0 // pred_check
    _
  $region23: #{sample_convnet_forward.9} parent=0 // pred_check_branch
    %391 = sbr.rel (0) target = $region25
  $region24: #{sample_convnet_forward.9} parent=0 // pred_region
    _
  $region25: #{sample_convnet_forward.9} parent=0 // pred_fallthru
    _
  // Predicated region
  $region26: #{sample_convnet_forward.9} parent=0 // pred_check
    _
  $region27: #{sample_convnet_forward.9} parent=0 // pred_check_branch
    %393 = sbr.rel (0) target = $region29
  $region28: #{sample_convnet_forward.9} parent=0 // pred_region
    _
  $region29: #{sample_convnet_forward.9} parent=0 // pred_fallthru
    _

</llo_original>
